<compile_context>
chip_gen: v6e
topology: v6e:2x2x1
jax: 0.10.0
libtpu: 0.0.40
codegen_flags: <defaults>
</compile_context>

<pallas_src>
import functools
import numpy as np
import jax
import jax.numpy as jnp
from jax import lax
from jax.experimental import pallas as pl
from jax.experimental.pallas import tpu as pltpu

# Cross-batch mask value: exp(x - max) underflows to exactly 0.0 in f32, so
# masked entries contribute nothing to either softmax numerator or denominator.
_NEG_BIG = -1e30


# ----------------------------------------------------------------------------
# Kernel: one invocation, all batches folded into the MXU row dimension,
# heads handled by a small statically-unrolled loop over lane slices.
# ----------------------------------------------------------------------------
def _mha_kernel(q_ref, k_ref, wq_ref, wkv_ref, wo_ref, bias_ref,
                out_ref, scores_ref, *, scale, num_heads):
    U = wq_ref.shape[-1]
    d = U // num_heads

    # Fused projections (bf16 operands, f32 accumulation).  Q and the fused
    # K|V slab: two MXU passes total instead of 3*H tiny ones.
    qh = jnp.dot(q_ref[...], wq_ref[...],
                 preferred_element_type=jnp.float32) * scale        # [NT, U]
    kv = jnp.dot(k_ref[...], wkv_ref[...],
                 preferred_element_type=jnp.float32)                # [NT, 2U]
    qh = qh.astype(jnp.bfloat16)
    kh = kv[:, :U].astype(jnp.bfloat16)
    vh = kv[:, U:].astype(jnp.bfloat16)

    bias = bias_ref[...]      # [NT, NT] f32: per-batch bias on diagonal blocks,
                              # -1e30 on cross-batch blocks.

    p_parts, o_parts = [], []
    for h in range(num_heads):                                      # static unroll
        lo = h * d
        # S_h = Q_h @ K_h^T over the batch-folded [NT, d] operands -> [NT, NT]
        s = lax.dot_general(qh[:, lo:lo + d], kh[:, lo:lo + d],
                            (((1,), (1,)), ((), ())),
                            preferred_element_type=jnp.float32)
        s = s + bias                      # bias + cross-batch mask in one add
        # numerically-stable softmax over the key axis (f32)
        s = s - jnp.max(s, axis=-1, keepdims=True)
        e = jnp.exp(s)
        p = e * pl.reciprocal(jnp.sum(e, axis=-1, keepdims=True), approx=True)
        p_parts.append(p)
        o_parts.append(jnp.dot(p.astype(jnp.bfloat16), vh[:, lo:lo + d],
                               preferred_element_type=jnp.float32))  # [NT, d]

    # Lane-dense scores slab [NT, H*NT] — plain lane-offset concatenation,
    # no transpose/reshape relayout in-kernel; wrapper peels diagonal blocks.
    scores_ref[...] = jnp.concatenate(p_parts, axis=-1).astype(scores_ref.dtype)

    # Concatenate heads and run one fused output projection straight to out_ref.
    o_all = jnp.concatenate(o_parts, axis=-1).astype(jnp.bfloat16)   # [NT, U]
    out_ref[...] = jnp.dot(o_all, wo_ref[...],
                           preferred_element_type=jnp.float32).astype(out_ref.dtype)


def multi_head_attention_pallas(query, key, w_query, w_key, w_value, w_out,
                                bias_table, rel_pos_index, num_heads, key_dim,
                                window_size):
    """query: [N, Tq, Qd], key: [N, Tk, Kd]; weights PyTorch-style [out, in]."""
    N, Tq, Qd = query.shape
    _, Tk, Kd = key.shape
    U = w_query.shape[0]
    T = window_size[0] * window_size[1]
    assert Tq == T and Tk == T, "seq len must equal window area (bias add)"
    assert N == num_heads, "PyTorch bias broadcast requires N == num_heads"
    assert U % num_heads == 0
    NT = N * T

    # bf16 MXU operands (accumulation stays f32 in the kernel); wrapper-side
    # reshapes/casts are free XLA ops and halve the input DMA.
    q2 = query.reshape(NT, Qd).astype(jnp.bfloat16)
    k2 = key.reshape(NT, Kd).astype(jnp.bfloat16)
    wq = w_query.T.astype(jnp.bfloat16)                               # [Qd, U]
    wkv = jnp.concatenate([w_key.T, w_value.T], axis=1).astype(jnp.bfloat16)  # [Kd, 2U]
    wo = w_out.T.astype(jnp.bfloat16)                                 # [U, U]

    # Relative-position-bias gather -> [H, T, T].  Per the PyTorch quirk it is
    # indexed by the *batch* coordinate (requires N == H).
    bias = bias_table[rel_pos_index.reshape(-1)].reshape(T, T, num_heads)
    bias = jnp.transpose(bias, (2, 0, 1)).astype(jnp.float32)         # [N(=H), T, T]

    # Block-diagonal bias + cross-batch mask over the folded [NT, NT] scores:
    #   bias_big[n*T+q, m*T+k] = bias[n, q, k]  if n == m else -1e30
    same = (jnp.repeat(jnp.arange(N), T)[:, None] ==
            jnp.repeat(jnp.arange(N), T)[None, :])                    # [NT, NT] bool
    bias_rows = jnp.broadcast_to(bias[:, :, None, :], (N, T, N, T)).reshape(NT, NT)
    bias_big = jnp.where(same, bias_rows, jnp.float32(_NEG_BIG))

    scale = 1.0 / float(key_dim) ** 0.5
    kernel = functools.partial(_mha_kernel, scale=scale, num_heads=num_heads)

    out2, scores_slab = pl.pallas_call(
        kernel,
        out_shape=(
            jax.ShapeDtypeStruct((NT, U), jnp.float32),
            jax.ShapeDtypeStruct((NT, num_heads * NT), jnp.float32),
        ),
        grid=(1,),                                   # single step on every generation
        in_specs=[
            pl.BlockSpec((NT, Qd), lambda i: (0, 0)),          # query (flattened)
            pl.BlockSpec((NT, Kd), lambda i: (0, 0)),          # key   (flattened)
            pl.BlockSpec((Qd, U), lambda i: (0, 0)),           # Wq
            pl.BlockSpec((Kd, 2 * U), lambda i: (0, 0)),       # Wk|Wv fused
            pl.BlockSpec((U, U), lambda i: (0, 0)),            # Wout
            pl.BlockSpec((NT, NT), lambda i: (0, 0)),          # bias + block mask
        ],
        out_specs=(
            pl.BlockSpec((NT, U), lambda i: (0, 0)),
            pl.BlockSpec((NT, num_heads * NT), lambda i: (0, 0)),
        ),
        compiler_params=pltpu.CompilerParams(
            dimension_semantics=("arbitrary",)),
    )(q2, k2, wq, wkv, wo, bias_big)

    out = out2.reshape(N, T, U)

    # Peel the per-batch diagonal blocks back to [H, N, Tq, Tk] (wrapper XLA).
    scores_full = (scores_slab.reshape(NT, num_heads, NT)
                   .transpose(1, 0, 2)
                   .reshape(num_heads, N, T, N, T))
    scores = jnp.transpose(jnp.diagonal(scores_full, axis1=1, axis2=3),
                           (0, 3, 1, 2))                              # [H, N, T, T]
    return out, scores


# ----------------------------------------------------------------------------
# Pure-JAX reference mirroring the PyTorch forward (mask=None path, f32)
# ----------------------------------------------------------------------------
def reference(query, key, w_query, w_key, w_value, w_out, bias_table,
              rel_pos_index, num_heads, key_dim, window_size):
    qs = query @ w_query.T
    ks = key @ w_key.T
    vs = key @ w_value.T
    qs = jnp.stack(jnp.split(qs, num_heads, axis=2), axis=0)  # [H, N, Tq, d]
    ks = jnp.stack(jnp.split(ks, num_heads, axis=2), axis=0)
    vs = jnp.stack(jnp.split(vs, num_heads, axis=2), axis=0)
    scores = jnp.einsum("hnqd,hnkd->hnqk", qs, ks)
    T = window_size[0] * window_size[1]
    bias = bias_table[rel_pos_index.reshape(-1)].reshape(T, T, num_heads)
    bias = jnp.transpose(bias, (2, 0, 1))
    scores = scores / float(key_dim) ** 0.5
    scores = scores + bias[None]
    scores = jax.nn.softmax(scores, axis=3)
    out = jnp.einsum("hnqk,hnkd->hnqd", scores, vs)
    out = jnp.concatenate(jnp.split(out, num_heads, axis=0), axis=3)[0]
    out = out @ w_out.T
    return out, scores


def make_relative_position_index(window_size):
    wh, ww = window_size
    coords_h = np.arange(wh)
    coords_w = np.arange(ww)
    coords = np.stack(np.meshgrid(coords_h, coords_w, indexing="ij"))  # [2,wh,ww]
    coords_flatten = coords.reshape(2, -1)
    rel = coords_flatten[:, :, None] - coords_flatten[:, None, :]
    rel = rel.transpose(1, 2, 0).copy()
    rel[:, :, 0] += wh - 1
    rel[:, :, 1] += ww - 1
    rel[:, :, 0] *= 2 * ww - 1
    return jnp.asarray(rel.sum(-1), dtype=jnp.int32)  # [wh*ww, wh*ww]


if __name__ == "__main__":
    # Small, module-consistent shapes.
    query_dim = 32
    key_dim = 32
    num_units = 32
    num_heads = 4
    window_size = (4, 4)
    T = window_size[0] * window_size[1]   # 16
    N = num_heads                          # required by the PyTorch bias broadcast

    key0 = jax.random.PRNGKey(0)
    k1, k2, k3, k4, k5, k6, k7, k8 = jax.random.split(key0, 8)

    query = jax.random.normal(k1, (N, T, query_dim), dtype=jnp.float32)
    keyx = jax.random.normal(k2, (N, T, key_dim), dtype=jnp.float32)

    # Deterministic synthetic parameters (PyTorch inits the bias table to
    # zeros; use non-trivial values so the bias path is actually exercised).
    w_query = 0.05 * jax.random.normal(k3, (num_units, query_dim), jnp.float32)
    w_key = 0.05 * jax.random.normal(k4, (num_units, key_dim), jnp.float32)
    w_value = 0.05 * jax.random.normal(k5, (num_units, key_dim), jnp.float32)
    w_out = 0.05 * jax.random.normal(k6, (num_units, num_units), jnp.float32)
    bias_table = 0.5 * jax.random.normal(
        k7, ((2 * window_size[0] - 1) * (2 * window_size[1] - 1), num_heads),
        jnp.float32)
    rel_pos_index = make_relative_position_index(window_size)

    out, scores = multi_head_attention_pallas(
        query, keyx, w_query, w_key, w_value, w_out, bias_table,
        rel_pos_index, num_heads, key_dim, window_size)
    jax.block_until_ready((out, scores))

    out_ref, scores_ref = reference(
        query, keyx, w_query, w_key, w_value, w_out, bias_table,
        rel_pos_index, num_heads, key_dim, window_size)

    # Tolerances relaxed for bf16 MXU operands + approx reciprocal (per review);
    # observed errors are ~1e-3, structural bugs would be ~1e-1.
    np.testing.assert_allclose(np.asarray(out), np.asarray(out_ref),
                               rtol=2e-2, atol=2e-2)
    np.testing.assert_allclose(np.asarray(scores), np.asarray(scores_ref),
                               rtol=2e-2, atol=2e-2)
    print("KERNEL_OK")
</pallas_src>

<mosaic_0001>
module attributes {stable_mosaic.version = 11 : i64} {
  func.func @_mha_kernel(%arg0: i32, %arg1: memref<64x32xbf16, #tpu.memory_space<vmem>>, %arg2: memref<64x32xbf16, #tpu.memory_space<vmem>>, %arg3: memref<32x32xbf16, #tpu.memory_space<vmem>>, %arg4: memref<32x64xbf16, #tpu.memory_space<vmem>>, %arg5: memref<32x32xbf16, #tpu.memory_space<vmem>>, %arg6: memref<64x64xf32, #tpu.memory_space<vmem>>, %arg7: memref<64x32xf32, #tpu.memory_space<vmem>>, %arg8: memref<64x256xf32, #tpu.memory_space<vmem>>) attributes {dimension_semantics = [#tpu.dimension_semantics<arbitrary>], iteration_bounds = array<i64: 1>, scalar_prefetch = 0 : i64, scratch_operands = 0 : i64, tpu.core_type = #tpu.core_type<tc>, window_params = [{pipeline_mode = #tpu.pipeline_mode<synchronous>, transform_indices = @transform_0, window_bounds = array<i64: 64, 32>}, {pipeline_mode = #tpu.pipeline_mode<synchronous>, transform_indices = @transform_1, window_bounds = array<i64: 64, 32>}, {pipeline_mode = #tpu.pipeline_mode<synchronous>, transform_indices = @transform_2, window_bounds = array<i64: 32, 32>}, {pipeline_mode = #tpu.pipeline_mode<synchronous>, transform_indices = @transform_3, window_bounds = array<i64: 32, 64>}, {pipeline_mode = #tpu.pipeline_mode<synchronous>, transform_indices = @transform_4, window_bounds = array<i64: 32, 32>}, {pipeline_mode = #tpu.pipeline_mode<synchronous>, transform_indices = @transform_5, window_bounds = array<i64: 64, 64>}, {pipeline_mode = #tpu.pipeline_mode<synchronous>, transform_indices = @transform_6, window_bounds = array<i64: 64, 32>}, {pipeline_mode = #tpu.pipeline_mode<synchronous>, transform_indices = @transform_7, window_bounds = array<i64: 64, 256>}]} {
    %c0 = arith.constant 0 : index
    %c0_0 = arith.constant 0 : index
    %0 = vector.load %arg1[%c0, %c0_0] : memref<64x32xbf16, #tpu.memory_space<vmem>>, vector<64x32xbf16>
    %c0_1 = arith.constant 0 : index
    %c0_2 = arith.constant 0 : index
    %1 = vector.load %arg3[%c0_1, %c0_2] : memref<32x32xbf16, #tpu.memory_space<vmem>>, vector<32x32xbf16>
    %cst = arith.constant dense<0.000000e+00> : vector<64x32xf32>
    %2 = tpu.matmul %0, %1, %cst {dimension_numbers = #tpu.dot_dimension_numbers<[1], [0], [0], [1], [0, 0, 1, 1], [], []>} : vector<64x32xbf16>, vector<32x32xbf16>, vector<64x32xf32> -> vector<64x32xf32>
    %cst_3 = arith.constant 0.176776692 : f32
    %3 = vector.broadcast %cst_3 : f32 to vector<64x32xf32>
    %4 = arith.mulf %2, %3 : vector<64x32xf32>
    %c0_4 = arith.constant 0 : index
    %c0_5 = arith.constant 0 : index
    %5 = vector.load %arg2[%c0_4, %c0_5] : memref<64x32xbf16, #tpu.memory_space<vmem>>, vector<64x32xbf16>
    %c0_6 = arith.constant 0 : index
    %c0_7 = arith.constant 0 : index
    %6 = vector.load %arg4[%c0_6, %c0_7] : memref<32x64xbf16, #tpu.memory_space<vmem>>, vector<32x64xbf16>
    %cst_8 = arith.constant dense<0.000000e+00> : vector<64x64xf32>
    %7 = tpu.matmul %5, %6, %cst_8 {dimension_numbers = #tpu.dot_dimension_numbers<[1], [0], [0], [1], [0, 0, 1, 1], [], []>} : vector<64x32xbf16>, vector<32x64xbf16>, vector<64x64xf32> -> vector<64x64xf32>
    %8 = arith.truncf %4 : vector<64x32xf32> to vector<64x32xbf16>
    %9 = vector.extract_strided_slice %7 {offsets = [0, 0], sizes = [64, 32], strides = [1, 1]} : vector<64x64xf32> to vector<64x32xf32>
    %10 = arith.truncf %9 : vector<64x32xf32> to vector<64x32xbf16>
    %11 = vector.extract_strided_slice %7 {offsets = [0, 32], sizes = [64, 32], strides = [1, 1]} : vector<64x64xf32> to vector<64x32xf32>
    %12 = arith.truncf %11 : vector<64x32xf32> to vector<64x32xbf16>
    %c0_9 = arith.constant 0 : index
    %c0_10 = arith.constant 0 : index
    %13 = vector.load %arg6[%c0_9, %c0_10] : memref<64x64xf32, #tpu.memory_space<vmem>>, vector<64x64xf32>
    %14 = vector.extract_strided_slice %8 {offsets = [0, 0], sizes = [64, 8], strides = [1, 1]} : vector<64x32xbf16> to vector<64x8xbf16>
    %15 = vector.extract_strided_slice %10 {offsets = [0, 0], sizes = [64, 8], strides = [1, 1]} : vector<64x32xbf16> to vector<64x8xbf16>
    %cst_11 = arith.constant dense<0.000000e+00> : vector<64x64xf32>
    %16 = tpu.matmul %14, %15, %cst_11 {dimension_numbers = #tpu.dot_dimension_numbers<[1], [1], [0], [0], [0, 0, 1, 0], [], []>} : vector<64x8xbf16>, vector<64x8xbf16>, vector<64x64xf32> -> vector<64x64xf32>
    %17 = arith.addf %16, %13 : vector<64x64xf32>
    %cst_12 = arith.constant dense<0xFF800000> : vector<64xf32>
    %18 = vector.multi_reduction <maximumf>, %17, %cst_12 [1] : vector<64x64xf32> to vector<64xf32>
    %19 = vector.shape_cast %18 : vector<64xf32> to vector<64x1xf32>
    %20 = vector.broadcast %19 : vector<64x1xf32> to vector<64x64xf32>
    %21 = arith.subf %17, %20 : vector<64x64xf32>
    %22 = math.exp %21 : vector<64x64xf32>
    %cst_13 = arith.constant dense<0.000000e+00> : vector<64xf32>
    %23 = vector.multi_reduction <add>, %22, %cst_13 [1] : vector<64x64xf32> to vector<64xf32>
    %24 = vector.shape_cast %23 : vector<64xf32> to vector<64x1xf32>
    %25 = tpu.reciprocal %24 {approx = true} : vector<64x1xf32> -> vector<64x1xf32>
    %26 = vector.broadcast %25 : vector<64x1xf32> to vector<64x64xf32>
    %27 = arith.mulf %22, %26 : vector<64x64xf32>
    %28 = arith.truncf %27 : vector<64x64xf32> to vector<64x64xbf16>
    %29 = vector.extract_strided_slice %12 {offsets = [0, 0], sizes = [64, 8], strides = [1, 1]} : vector<64x32xbf16> to vector<64x8xbf16>
    %cst_14 = arith.constant dense<0.000000e+00> : vector<64x8xf32>
    %30 = tpu.matmul %28, %29, %cst_14 {dimension_numbers = #tpu.dot_dimension_numbers<[1], [0], [0], [1], [0, 0, 1, 1], [], []>} : vector<64x64xbf16>, vector<64x8xbf16>, vector<64x8xf32> -> vector<64x8xf32>
    %31 = vector.extract_strided_slice %8 {offsets = [0, 8], sizes = [64, 8], strides = [1, 1]} : vector<64x32xbf16> to vector<64x8xbf16>
    %32 = vector.extract_strided_slice %10 {offsets = [0, 8], sizes = [64, 8], strides = [1, 1]} : vector<64x32xbf16> to vector<64x8xbf16>
    %cst_15 = arith.constant dense<0.000000e+00> : vector<64x64xf32>
    %33 = tpu.matmul %31, %32, %cst_15 {dimension_numbers = #tpu.dot_dimension_numbers<[1], [1], [0], [0], [0, 0, 1, 0], [], []>} : vector<64x8xbf16>, vector<64x8xbf16>, vector<64x64xf32> -> vector<64x64xf32>
    %34 = arith.addf %33, %13 : vector<64x64xf32>
    %cst_16 = arith.constant dense<0xFF800000> : vector<64xf32>
    %35 = vector.multi_reduction <maximumf>, %34, %cst_16 [1] : vector<64x64xf32> to vector<64xf32>
    %36 = vector.shape_cast %35 : vector<64xf32> to vector<64x1xf32>
    %37 = vector.broadcast %36 : vector<64x1xf32> to vector<64x64xf32>
    %38 = arith.subf %34, %37 : vector<64x64xf32>
    %39 = math.exp %38 : vector<64x64xf32>
    %cst_17 = arith.constant dense<0.000000e+00> : vector<64xf32>
    %40 = vector.multi_reduction <add>, %39, %cst_17 [1] : vector<64x64xf32> to vector<64xf32>
    %41 = vector.shape_cast %40 : vector<64xf32> to vector<64x1xf32>
    %42 = tpu.reciprocal %41 {approx = true} : vector<64x1xf32> -> vector<64x1xf32>
    %43 = vector.broadcast %42 : vector<64x1xf32> to vector<64x64xf32>
    %44 = arith.mulf %39, %43 : vector<64x64xf32>
    %45 = arith.truncf %44 : vector<64x64xf32> to vector<64x64xbf16>
    %46 = vector.extract_strided_slice %12 {offsets = [0, 8], sizes = [64, 8], strides = [1, 1]} : vector<64x32xbf16> to vector<64x8xbf16>
    %cst_18 = arith.constant dense<0.000000e+00> : vector<64x8xf32>
    %47 = tpu.matmul %45, %46, %cst_18 {dimension_numbers = #tpu.dot_dimension_numbers<[1], [0], [0], [1], [0, 0, 1, 1], [], []>} : vector<64x64xbf16>, vector<64x8xbf16>, vector<64x8xf32> -> vector<64x8xf32>
    %48 = vector.extract_strided_slice %8 {offsets = [0, 16], sizes = [64, 8], strides = [1, 1]} : vector<64x32xbf16> to vector<64x8xbf16>
    %49 = vector.extract_strided_slice %10 {offsets = [0, 16], sizes = [64, 8], strides = [1, 1]} : vector<64x32xbf16> to vector<64x8xbf16>
    %cst_19 = arith.constant dense<0.000000e+00> : vector<64x64xf32>
    %50 = tpu.matmul %48, %49, %cst_19 {dimension_numbers = #tpu.dot_dimension_numbers<[1], [1], [0], [0], [0, 0, 1, 0], [], []>} : vector<64x8xbf16>, vector<64x8xbf16>, vector<64x64xf32> -> vector<64x64xf32>
    %51 = arith.addf %50, %13 : vector<64x64xf32>
    %cst_20 = arith.constant dense<0xFF800000> : vector<64xf32>
    %52 = vector.multi_reduction <maximumf>, %51, %cst_20 [1] : vector<64x64xf32> to vector<64xf32>
    %53 = vector.shape_cast %52 : vector<64xf32> to vector<64x1xf32>
    %54 = vector.broadcast %53 : vector<64x1xf32> to vector<64x64xf32>
    %55 = arith.subf %51, %54 : vector<64x64xf32>
    %56 = math.exp %55 : vector<64x64xf32>
    %cst_21 = arith.constant dense<0.000000e+00> : vector<64xf32>
    %57 = vector.multi_reduction <add>, %56, %cst_21 [1] : vector<64x64xf32> to vector<64xf32>
    %58 = vector.shape_cast %57 : vector<64xf32> to vector<64x1xf32>
    %59 = tpu.reciprocal %58 {approx = true} : vector<64x1xf32> -> vector<64x1xf32>
    %60 = vector.broadcast %59 : vector<64x1xf32> to vector<64x64xf32>
    %61 = arith.mulf %56, %60 : vector<64x64xf32>
    %62 = arith.truncf %61 : vector<64x64xf32> to vector<64x64xbf16>
    %63 = vector.extract_strided_slice %12 {offsets = [0, 16], sizes = [64, 8], strides = [1, 1]} : vector<64x32xbf16> to vector<64x8xbf16>
    %cst_22 = arith.constant dense<0.000000e+00> : vector<64x8xf32>
    %64 = tpu.matmul %62, %63, %cst_22 {dimension_numbers = #tpu.dot_dimension_numbers<[1], [0], [0], [1], [0, 0, 1, 1], [], []>} : vector<64x64xbf16>, vector<64x8xbf16>, vector<64x8xf32> -> vector<64x8xf32>
    %65 = vector.extract_strided_slice %8 {offsets = [0, 24], sizes = [64, 8], strides = [1, 1]} : vector<64x32xbf16> to vector<64x8xbf16>
    %66 = vector.extract_strided_slice %10 {offsets = [0, 24], sizes = [64, 8], strides = [1, 1]} : vector<64x32xbf16> to vector<64x8xbf16>
    %cst_23 = arith.constant dense<0.000000e+00> : vector<64x64xf32>
    %67 = tpu.matmul %65, %66, %cst_23 {dimension_numbers = #tpu.dot_dimension_numbers<[1], [1], [0], [0], [0, 0, 1, 0], [], []>} : vector<64x8xbf16>, vector<64x8xbf16>, vector<64x64xf32> -> vector<64x64xf32>
    %68 = arith.addf %67, %13 : vector<64x64xf32>
    %cst_24 = arith.constant dense<0xFF800000> : vector<64xf32>
    %69 = vector.multi_reduction <maximumf>, %68, %cst_24 [1] : vector<64x64xf32> to vector<64xf32>
    %70 = vector.shape_cast %69 : vector<64xf32> to vector<64x1xf32>
    %71 = vector.broadcast %70 : vector<64x1xf32> to vector<64x64xf32>
    %72 = arith.subf %68, %71 : vector<64x64xf32>
    %73 = math.exp %72 : vector<64x64xf32>
    %cst_25 = arith.constant dense<0.000000e+00> : vector<64xf32>
    %74 = vector.multi_reduction <add>, %73, %cst_25 [1] : vector<64x64xf32> to vector<64xf32>
    %75 = vector.shape_cast %74 : vector<64xf32> to vector<64x1xf32>
    %76 = tpu.reciprocal %75 {approx = true} : vector<64x1xf32> -> vector<64x1xf32>
    %77 = vector.broadcast %76 : vector<64x1xf32> to vector<64x64xf32>
    %78 = arith.mulf %73, %77 : vector<64x64xf32>
    %79 = arith.truncf %78 : vector<64x64xf32> to vector<64x64xbf16>
    %80 = vector.extract_strided_slice %12 {offsets = [0, 24], sizes = [64, 8], strides = [1, 1]} : vector<64x32xbf16> to vector<64x8xbf16>
    %cst_26 = arith.constant dense<0.000000e+00> : vector<64x8xf32>
    %81 = tpu.matmul %79, %80, %cst_26 {dimension_numbers = #tpu.dot_dimension_numbers<[1], [0], [0], [1], [0, 0, 1, 1], [], []>} : vector<64x64xbf16>, vector<64x8xbf16>, vector<64x8xf32> -> vector<64x8xf32>
    %82 = tpu.concatenate %27, %44, %61, %78 in 1 : vector<64x64xf32>, vector<64x64xf32>, vector<64x64xf32>, vector<64x64xf32> -> vector<64x256xf32>
    %c0_27 = arith.constant 0 : index
    %c0_28 = arith.constant 0 : index
    %83 = vector.load %arg8[%c0_27, %c0_28] : memref<64x256xf32, #tpu.memory_space<vmem>>, vector<64x256xf32>
    tpu.vector_store %arg8[%c0_27, %c0_28], %82 {strides = array<i32>} : memref<64x256xf32, #tpu.memory_space<vmem>>, vector<64x256xf32>,
    %84 = tpu.concatenate %30, %47, %64, %81 in 1 : vector<64x8xf32>, vector<64x8xf32>, vector<64x8xf32>, vector<64x8xf32> -> vector<64x32xf32>
    %85 = arith.truncf %84 : vector<64x32xf32> to vector<64x32xbf16>
    %c0_29 = arith.constant 0 : index
    %c0_30 = arith.constant 0 : index
    %86 = vector.load %arg5[%c0_29, %c0_30] : memref<32x32xbf16, #tpu.memory_space<vmem>>, vector<32x32xbf16>
    %cst_31 = arith.constant dense<0.000000e+00> : vector<64x32xf32>
    %87 = tpu.matmul %85, %86, %cst_31 {dimension_numbers = #tpu.dot_dimension_numbers<[1], [0], [0], [1], [0, 0, 1, 1], [], []>} : vector<64x32xbf16>, vector<32x32xbf16>, vector<64x32xf32> -> vector<64x32xf32>
    %c0_32 = arith.constant 0 : index
    %c0_33 = arith.constant 0 : index
    %88 = vector.load %arg7[%c0_32, %c0_33] : memref<64x32xf32, #tpu.memory_space<vmem>>, vector<64x32xf32>
    tpu.vector_store %arg7[%c0_32, %c0_33], %87 {strides = array<i32>} : memref<64x32xf32, #tpu.memory_space<vmem>>, vector<64x32xf32>,
    return
  }
  func.func @transform_0(%arg0: i32) -> (i32, i32) {
    %c0_i32 = arith.constant 0 : i32
    %c0_i32_0 = arith.constant 0 : i32
    %c0_i32_1 = arith.constant 0 : i32
    return %c0_i32, %c0_i32_0 : i32, i32
  }
  func.func @transform_1(%arg0: i32) -> (i32, i32) {
    %c0_i32 = arith.constant 0 : i32
    %c0_i32_0 = arith.constant 0 : i32
    %c0_i32_1 = arith.constant 0 : i32
    return %c0_i32, %c0_i32_0 : i32, i32
  }
  func.func @transform_2(%arg0: i32) -> (i32, i32) {
    %c0_i32 = arith.constant 0 : i32
    %c0_i32_0 = arith.constant 0 : i32
    %c0_i32_1 = arith.constant 0 : i32
    return %c0_i32, %c0_i32_0 : i32, i32
  }
  func.func @transform_3(%arg0: i32) -> (i32, i32) {
    %c0_i32 = arith.constant 0 : i32
    %c0_i32_0 = arith.constant 0 : i32
    %c0_i32_1 = arith.constant 0 : i32
    return %c0_i32, %c0_i32_0 : i32, i32
  }
  func.func @transform_4(%arg0: i32) -> (i32, i32) {
    %c0_i32 = arith.constant 0 : i32
    %c0_i32_0 = arith.constant 0 : i32
    %c0_i32_1 = arith.constant 0 : i32
    return %c0_i32, %c0_i32_0 : i32, i32
  }
  func.func @transform_5(%arg0: i32) -> (i32, i32) {
    %c0_i32 = arith.constant 0 : i32
    %c0_i32_0 = arith.constant 0 : i32
    %c0_i32_1 = arith.constant 0 : i32
    return %c0_i32, %c0_i32_0 : i32, i32
  }
  func.func @transform_6(%arg0: i32) -> (i32, i32) {
    %c0_i32 = arith.constant 0 : i32
    %c0_i32_0 = arith.constant 0 : i32
    %c0_i32_1 = arith.constant 0 : i32
    return %c0_i32, %c0_i32_0 : i32, i32
  }
  func.func @transform_7(%arg0: i32) -> (i32, i32) {
    %c0_i32 = arith.constant 0 : i32
    %c0_i32_0 = arith.constant 0 : i32
    %c0_i32_1 = arith.constant 0 : i32
    return %c0_i32, %c0_i32_0 : i32, i32
  }
}

</mosaic_0001>

<llo_original>
// kernel: tpu_custom_call.1
$region0: #{tpu_custom_call.1}
  #allocation0 [shape = 'u32[]', space=smem, size = 0x4, offset = 0x4, fixed_abs, tag = 'smem constant byte address 0x4 - core index']
  #allocation1 [shape = 'u32[144,128]{1,0:T(1,128)}', space=vmem, size = 0x12000, scoped, tag = 'internal scratch']
  %s0 = inlined_call_operand.vmem [shape: bf16[64,32], index: 0, kind: input, shape index: {}]
  %s1 = inlined_call_operand.vmem [shape: bf16[64,32], index: 1, kind: input, shape index: {}]
  %s2 = inlined_call_operand.vmem [shape: bf16[32,32], index: 2, kind: input, shape index: {}]
  %s3 = inlined_call_operand.vmem [shape: bf16[32,64], index: 3, kind: input, shape index: {}]
  %s4 = inlined_call_operand.hbm [shape: bf16[32,32], index: 4, kind: input, shape index: {}]
  %s5 = inlined_call_operand.vmem [shape: f32[64,64], index: 5, kind: input, shape index: {}]
  %s6 = inlined_call_operand.vmem [shape: f32[64,32], index: 6, kind: output, shape index: {0}]
  %s7 = inlined_call_operand.hbm [shape: f32[64,256], index: 7, kind: output, shape index: {1}]
  %8 = xla_tuple %s6, %s7
  %s9 = sld [smem:[#allocation0]]
  $region46: #{tpu_custom_call.1} parent=0
    _
  %s11 = ssub.s32 1, %s9
  %s12 = scalar_select 0, %s11, %s9
  $region1: #{tpu_custom_call.1} parent=0
    #allocation2 [shape = 'u8[8192]{0}', space=vmem, size = 0x2000, scoped, tag = 'input window, operand 4, single buffered']
    #allocation3 [shape = 's32[1]{0}', space=sflag, size = 0x4, scoped, tag = 'scoped memory for tpu_custom_call.1']
    #allocation4 [shape = 's32[1]{0}', space=sflag, size = 0x4, scoped, tag = 'scoped memory for tpu_custom_call.1']
    #allocation5 [shape = 'u8[65536]{0}', space=vmem, size = 0x10000, scoped, tag = 'output window, operand 1, single buffered']
    %13 = vsyncpa [#allocation3], 0
    %14 = vsyncpa [#allocation4], 0
    // Predicated region
    $region2: #{tpu_custom_call.1} parent=1 // pred_check
      _
    $region3: #{tpu_custom_call.1} parent=1 // pred_check_branch
      %16 = sbr.rel (0) target = $region5
    $region4: #{tpu_custom_call.1} parent=1 // pred_region
      _
    $region5: #{tpu_custom_call.1} parent=1 // pred_fallthru
      _
    // Predicated region
    $region6: #{tpu_custom_call.1} parent=1 // pred_check
      _
    $region7: #{tpu_custom_call.1} parent=1 // pred_check_branch
      %18 = sbr.rel (0) target = $region9
    $region8: #{tpu_custom_call.1} parent=1 // pred_region
      _
    $region9: #{tpu_custom_call.1} parent=1 // pred_fallthru
      _
    // Predicated region
    $region10: #{tpu_custom_call.1} parent=1 // pred_check
      _
    $region11: #{tpu_custom_call.1} parent=1 // pred_check_branch
      %20 = sbr.rel (0) target = $region13
    $region12: #{tpu_custom_call.1} parent=1 // pred_region
      _
    $region13: #{tpu_custom_call.1} parent=1 // pred_fallthru
      _
    // Predicated region
    $region14: #{tpu_custom_call.1} parent=1 // pred_check
      _
    $region15: #{tpu_custom_call.1} parent=1 // pred_check_branch
      %22 = sbr.rel (0) target = $region17
    $region16: #{tpu_custom_call.1} parent=1 // pred_region
      _
    $region17: #{tpu_custom_call.1} parent=1 // pred_fallthru
      _
    // Predicated region
    $region18: #{tpu_custom_call.1} parent=1 // pred_check
      _
    $region19: #{tpu_custom_call.1} parent=1 // pred_check_branch
      %24 = sbr.rel (0) target = $region21
    $region20: #{tpu_custom_call.1} parent=1 // pred_region
      %s26 = ssub.s32 256, 256
      %27 = vsyncadd [#allocation3], %s26
      %s28 = sshll.u32 [#allocation2], 4
      %s29 = int_to_ptr.vmem [resolvable:$true] %s28
      %34 = dma.hbm_to_vmem [thread:$0]  %s4, 256, %s29, [#allocation3], 64, 64, 4
    $region21: #{tpu_custom_call.1} parent=1 // pred_fallthru
      _
    // Predicated region
    $region22: #{tpu_custom_call.1} parent=1 // pred_check
      _
    $region23: #{tpu_custom_call.1} parent=1 // pred_check_branch
      %36 = sbr.rel (0) target = $region25
    $region24: #{tpu_custom_call.1} parent=1 // pred_region
      _
    $region25: #{tpu_custom_call.1} parent=1 // pred_fallthru
      _
    // Predicated region
    $region26: #{tpu_custom_call.1} parent=1 // pred_check
      _
    $region27: #{tpu_custom_call.1} parent=1 // pred_check_branch
      %38 = sbr.rel (0) target = $region29
    $region28: #{tpu_custom_call.1} parent=1 // pred_region
      %39 = dma.done [#allocation3], 256
    $region29: #{tpu_custom_call.1} parent=1 // pred_fallthru
      _
    %v41 = vld [vmem:[%s0] sm:$0xf]
    %v42 = vld [vmem:[%s0 + $0x4] sm:$0xf]
    %v43 = vld [vmem:[%s0 + $0x8] sm:$0xf]
    %v44 = vld [vmem:[%s0 + $0xc] sm:$0xf]
    %v45 = vld [vmem:[%s0 + $0x10] sm:$0xf]
    %v46 = vld [vmem:[%s0 + $0x14] sm:$0xf]
    %v47 = vld [vmem:[%s0 + $0x18] sm:$0xf]
    %v48 = vld [vmem:[%s0 + $0x1c] sm:$0xf]
    %v49 = vld [vmem:[%s2] sm:$0xf]
    %v50 = vld [vmem:[%s2 + $0x4] sm:$0xf]
    %v51 = vld [vmem:[%s2 + $0x8] sm:$0xf]
    %v52 = vld [vmem:[%s2 + $0xc] sm:$0xf]
    %v61 = vunpack.c.l.b16 %v41
    %v62 = vunpack.c.l.b16 %v42
    %v63 = vunpack.c.l.b16 %v43
    %v64 = vunpack.c.l.b16 %v44
    %v65 = vunpack.c.l.b16 %v45
    %v66 = vunpack.c.l.b16 %v46
    %v67 = vunpack.c.l.b16 %v47
    %v68 = vunpack.c.l.b16 %v48
    %v69 = vpack.c.b16 %v62, %v61
    %v70 = vpack.c.b16 %v64, %v63
    %v71 = vpack.c.b16 %v66, %v65
    %v72 = vpack.c.b16 %v68, %v67
    %v77 = vunpack.c.l.b16 %v49
    %v78 = vunpack.c.l.b16 %v50
    %v79 = vunpack.c.l.b16 %v51
    %v80 = vunpack.c.l.b16 %v52
    %v81 = vpack.c.b16 %v78, %v77
    %v82 = vpack.c.b16 %v80, %v79
    %vm85 = vcmask 261120
    %v87 = vsel %vm85, %v69, 0
    %v90 = vsel %vm85, %v70, 0
    %v93 = vsel %vm85, %v71, 0
    %v96 = vsel %vm85, %v72, 0
    %98 = vmatprep.subr.bf16.mxu0 0
    %99 = vmatpush1.bf16.msra.mxu0 0
    %100 = vmatprep.subr.bf16.mxu0 0
    %101 = vmatpush1.bf16.msra.mxu0 0
    %102 = vmatprep.subr.bf16.mxu0 0
    %103 = vmatpush1.bf16.msra.mxu0 0
    %104 = vmatprep.subr.bf16.mxu0 0
    %105 = vmatpush1.bf16.msra.mxu0 0
    %106 = vmatprep.subr.bf16.mxu0 0
    %107 = vmatpush1.bf16.msra.mxu0 0
    %108 = vmatprep.subr.bf16.mxu0 0
    %109 = vmatpush1.bf16.msra.mxu0 0
    %110 = vmatprep.subr.bf16.mxu0 0
    %111 = vmatpush1.bf16.msra.mxu0 %v82
    %112 = vmatprep.subr.bf16.mxu0 0
    %113 = vmatpush1.bf16.msra.mxu0 %v81
    %114 = vmatprep.subr.bf16.mxu0 0
    %115 = vmatpush2.bf16.msra.mxu0 0
    %116 = vmatprep.subr.bf16.mxu0 0
    %117 = vmatpush2.bf16.msra.mxu0 0
    %118 = vmatprep.subr.bf16.mxu0 0
    %119 = vmatpush2.bf16.msra.mxu0 0
    %120 = vmatprep.subr.bf16.mxu0 0
    %121 = vmatpush2.bf16.msra.mxu0 0
    %122 = vmatprep.subr.bf16.mxu0 0
    %123 = vmatpush2.bf16.msra.mxu0 0
    %124 = vmatprep.subr.bf16.mxu0 0
    %125 = vmatpush2.bf16.msra.mxu0 0
    %126 = vmatprep.subr.bf16.mxu0 0
    %127 = vmatpush2.bf16.msra.mxu0 0
    %128 = vmatprep.subr.bf16.mxu0 0
    %129 = vmatpush2.bf16.msra.mxu0 0
    %130 = vmatprep.mubr.bf16.mxu0 0
    %131 = vmatmul.mubr.bf16.gmra.mxu0 %v87
    %v132 = vpop.f32.mrf.mxu0
    %v133 = vadd.f32 0.0, %v132
    %v134 = vpop.f32.mrf.mxu0
    %v135 = vpop.f32.mrf.mxu0
    %v136 = vadd.f32 0.0, %v135
    %v137 = vpop.f32.mrf.mxu0
    %138 = vmatprep.mubr.bf16.mxu0 0
    %139 = vmatmul.mubr.bf16.gmra.mxu0 %v90
    %v140 = vpop.f32.mrf.mxu0
    %v141 = vadd.f32 0.0, %v140
    %v142 = vpop.f32.mrf.mxu0
    %v143 = vpop.f32.mrf.mxu0
    %v144 = vadd.f32 0.0, %v143
    %v145 = vpop.f32.mrf.mxu0
    %146 = vmatprep.mubr.bf16.mxu0 0
    %147 = vmatmul.mubr.bf16.gmra.mxu0 %v93
    %v148 = vpop.f32.mrf.mxu0
    %v149 = vadd.f32 0.0, %v148
    %v150 = vpop.f32.mrf.mxu0
    %v151 = vpop.f32.mrf.mxu0
    %v152 = vadd.f32 0.0, %v151
    %v153 = vpop.f32.mrf.mxu0
    %154 = vmatprep.mubr.bf16.mxu0 0
    %155 = vmatmul.mubr.bf16.gmra.mxu0 %v96
    %v156 = vpop.f32.mrf.mxu0
    %v157 = vadd.f32 0.0, %v156
    %v158 = vpop.f32.mrf.mxu0
    %v159 = vpop.f32.mrf.mxu0
    %v160 = vadd.f32 0.0, %v159
    %v161 = vpop.f32.mrf.mxu0
    %162 = vdwg.mxu0
    %v163 = vmul.f32 %v133, 0.17677669
    %v164 = vmul.f32 %v136, 0.17677669
    %v165 = vmul.f32 %v141, 0.17677669
    %v166 = vmul.f32 %v144, 0.17677669
    %v167 = vmul.f32 %v149, 0.17677669
    %v168 = vmul.f32 %v152, 0.17677669
    %v169 = vmul.f32 %v157, 0.17677669
    %v170 = vmul.f32 %v160, 0.17677669
    %v171 = vld [vmem:[%s1] sm:$0xf]
    %v172 = vld [vmem:[%s1 + $0x4] sm:$0xf]
    %v173 = vld [vmem:[%s1 + $0x8] sm:$0xf]
    %v174 = vld [vmem:[%s1 + $0xc] sm:$0xf]
    %v175 = vld [vmem:[%s1 + $0x10] sm:$0xf]
    %v176 = vld [vmem:[%s1 + $0x14] sm:$0xf]
    %v177 = vld [vmem:[%s1 + $0x18] sm:$0xf]
    %v178 = vld [vmem:[%s1 + $0x1c] sm:$0xf]
    %v179 = vld [vmem:[%s3] sm:$0xf]
    %v180 = vld [vmem:[%s3 + $0x4] sm:$0xf]
    %v181 = vld [vmem:[%s3 + $0x8] sm:$0xf]
    %v182 = vld [vmem:[%s3 + $0xc] sm:$0xf]
    %v191 = vunpack.c.l.b16 %v171
    %v192 = vunpack.c.l.b16 %v172
    %v193 = vunpack.c.l.b16 %v173
    %v194 = vunpack.c.l.b16 %v174
    %v195 = vunpack.c.l.b16 %v175
    %v196 = vunpack.c.l.b16 %v176
    %v197 = vunpack.c.l.b16 %v177
    %v198 = vunpack.c.l.b16 %v178
    %v199 = vpack.c.b16 %v192, %v191
    %v200 = vpack.c.b16 %v194, %v193
    %v201 = vpack.c.b16 %v196, %v195
    %v202 = vpack.c.b16 %v198, %v197
    %v207 = vunpack.c.l.b16 %v179
    %v208 = vunpack.c.l.b16 %v180
    %v209 = vunpack.c.l.b16 %v181
    %v210 = vunpack.c.l.b16 %v182
    %v211 = vpack.c.b16 %v208, %v207
    %v212 = vpack.c.b16 %v210, %v209
    %v216 = vsel %vm85, %v199, 0
    %v219 = vsel %vm85, %v200, 0
    %v222 = vsel %vm85, %v201, 0
    %v225 = vsel %vm85, %v202, 0
    %227 = vmatprep.subr.bf16.mxu0 0
    %228 = vmatpush1.bf16.msra.mxu0 0
    %229 = vmatprep.subr.bf16.mxu0 0
    %230 = vmatpush1.bf16.msra.mxu0 0
    %231 = vmatprep.subr.bf16.mxu0 0
    %232 = vmatpush1.bf16.msra.mxu0 0
    %233 = vmatprep.subr.bf16.mxu0 0
    %234 = vmatpush1.bf16.msra.mxu0 0
    %235 = vmatprep.subr.bf16.mxu0 0
    %236 = vmatpush1.bf16.msra.mxu0 0
    %237 = vmatprep.subr.bf16.mxu0 0
    %238 = vmatpush1.bf16.msra.mxu0 0
    %239 = vmatprep.subr.bf16.mxu0 0
    %240 = vmatpush1.bf16.msra.mxu0 %v212
    %241 = vmatprep.subr.bf16.mxu0 0
    %242 = vmatpush1.bf16.msra.mxu0 %v211
    %243 = vmatprep.subr.bf16.mxu0 0
    %244 = vmatpush2.bf16.msra.mxu0 0
    %245 = vmatprep.subr.bf16.mxu0 0
    %246 = vmatpush2.bf16.msra.mxu0 0
    %247 = vmatprep.subr.bf16.mxu0 0
    %248 = vmatpush2.bf16.msra.mxu0 0
    %249 = vmatprep.subr.bf16.mxu0 0
    %250 = vmatpush2.bf16.msra.mxu0 0
    %251 = vmatprep.subr.bf16.mxu0 0
    %252 = vmatpush2.bf16.msra.mxu0 0
    %253 = vmatprep.subr.bf16.mxu0 0
    %254 = vmatpush2.bf16.msra.mxu0 0
    %255 = vmatprep.subr.bf16.mxu0 0
    %256 = vmatpush2.bf16.msra.mxu0 0
    %257 = vmatprep.subr.bf16.mxu0 0
    %258 = vmatpush2.bf16.msra.mxu0 0
    %259 = vmatprep.mubr.bf16.mxu0 0
    %260 = vmatmul.mubr.bf16.gmra.mxu0 %v216
    %v261 = vpop.f32.mrf.mxu0
    %v262 = vadd.f32 0.0, %v261
    %v263 = vpop.f32.mrf.mxu0
    %v264 = vpop.f32.mrf.mxu0
    %v265 = vadd.f32 0.0, %v264
    %v266 = vpop.f32.mrf.mxu0
    %267 = vmatprep.mubr.bf16.mxu0 0
    %268 = vmatmul.mubr.bf16.gmra.mxu0 %v219
    %v269 = vpop.f32.mrf.mxu0
    %v270 = vadd.f32 0.0, %v269
    %v271 = vpop.f32.mrf.mxu0
    %v272 = vpop.f32.mrf.mxu0
    %v273 = vadd.f32 0.0, %v272
    %v274 = vpop.f32.mrf.mxu0
    %275 = vmatprep.mubr.bf16.mxu0 0
    %276 = vmatmul.mubr.bf16.gmra.mxu0 %v222
    %v277 = vpop.f32.mrf.mxu0
    %v278 = vadd.f32 0.0, %v277
    %v279 = vpop.f32.mrf.mxu0
    %v280 = vpop.f32.mrf.mxu0
    %v281 = vadd.f32 0.0, %v280
    %v282 = vpop.f32.mrf.mxu0
    %283 = vmatprep.mubr.bf16.mxu0 0
    %284 = vmatmul.mubr.bf16.gmra.mxu0 %v225
    %v285 = vpop.f32.mrf.mxu0
    %v286 = vadd.f32 0.0, %v285
    %v287 = vpop.f32.mrf.mxu0
    %v288 = vpop.f32.mrf.mxu0
    %v289 = vadd.f32 0.0, %v288
    %v290 = vpop.f32.mrf.mxu0
    %291 = vdwg.mxu0
    %v292 = vpack.c.bf16 %v164, %v163
    %v293 = vpack.c.bf16 %v166, %v165
    %v294 = vpack.c.bf16 %v168, %v167
    %v295 = vpack.c.bf16 %v170, %v169
    %v296 = vpack.c.bf16 %v265, %v262
    %v297 = vpack.c.bf16 %v273, %v270
    %v298 = vpack.c.bf16 %v281, %v278
    %v299 = vpack.c.bf16 %v289, %v286
    %v300 = vld [vmem:[%s5] sm:$0xff]
    %v301 = vld [vmem:[%s5 + $0x8] sm:$0xff]
    %v302 = vld [vmem:[%s5 + $0x10] sm:$0xff]
    %v303 = vld [vmem:[%s5 + $0x18] sm:$0xff]
    %v304 = vld [vmem:[%s5 + $0x20] sm:$0xff]
    %v305 = vld [vmem:[%s5 + $0x28] sm:$0xff]
    %v306 = vld [vmem:[%s5 + $0x30] sm:$0xff]
    %v307 = vld [vmem:[%s5 + $0x38] sm:$0xff]
    %vm308 = vcmask 64512
    %v310 = vsel %vm308, %v292, 0
    %v313 = vsel %vm308, %v293, 0
    %v316 = vsel %vm308, %v294, 0
    %v319 = vsel %vm308, %v295, 0
    %v322 = vsel %vm308, %v296, 0
    %v325 = vsel %vm308, %v297, 0
    %v328 = vsel %vm308, %v298, 0
    %v331 = vsel %vm308, %v299, 0
    %333 = vmatprep.subr.bf16.mxu0 0
    %334 = vmatpush1.bf16.xpose.msra.mxu0 0
    %335 = vmatprep.subr.bf16.mxu0 0
    %336 = vmatpush1.bf16.xpose.msra.mxu0 0
    %337 = vmatprep.subr.bf16.mxu0 0
    %338 = vmatpush1.bf16.xpose.msra.mxu0 0
    %339 = vmatprep.subr.bf16.mxu0 0
    %340 = vmatpush1.bf16.xpose.msra.mxu0 0
    %341 = vmatprep.subr.bf16.mxu0 0
    %342 = vmatpush1.bf16.xpose.msra.mxu0 %v331
    %343 = vmatprep.subr.bf16.mxu0 0
    %344 = vmatpush1.bf16.xpose.msra.mxu0 %v328
    %345 = vmatprep.subr.bf16.mxu0 0
    %346 = vmatpush1.bf16.xpose.msra.mxu0 %v325
    %347 = vmatprep.subr.bf16.mxu0 0
    %348 = vmatpush1.bf16.xpose.msra.mxu0 %v322
    %349 = vmatprep.subr.bf16.mxu0 0
    %350 = vmatpush2.bf16.xpose.msra.mxu0 0
    %351 = vmatprep.subr.bf16.mxu0 0
    %352 = vmatpush2.bf16.xpose.msra.mxu0 0
    %353 = vmatprep.subr.bf16.mxu0 0
    %354 = vmatpush2.bf16.xpose.msra.mxu0 0
    %355 = vmatprep.subr.bf16.mxu0 0
    %356 = vmatpush2.bf16.xpose.msra.mxu0 0
    %357 = vmatprep.subr.bf16.mxu0 0
    %358 = vmatpush2.bf16.xpose.msra.mxu0 0
    %359 = vmatprep.subr.bf16.mxu0 0
    %360 = vmatpush2.bf16.xpose.msra.mxu0 0
    %361 = vmatprep.subr.bf16.mxu0 0
    %362 = vmatpush2.bf16.xpose.msra.mxu0 0
    %363 = vmatprep.subr.bf16.mxu0 0
    %364 = vmatpush2.bf16.xpose.msra.mxu0 0
    %365 = vmatprep.mubr.bf16.mxu0 0
    %366 = vmatmul.mubr.bf16.gmra.mxu0 %v310
    %v367 = vpop.f32.mrf.mxu0
    %v368 = vadd.f32 %v300, %v367
    %v369 = vpop.f32.mrf.mxu0
    %v370 = vpop.f32.mrf.mxu0
    %v371 = vadd.f32 %v301, %v370
    %v372 = vpop.f32.mrf.mxu0
    %373 = vmatprep.mubr.bf16.mxu0 0
    %374 = vmatmul.mubr.bf16.gmra.mxu0 %v313
    %v375 = vpop.f32.mrf.mxu0
    %v376 = vadd.f32 %v302, %v375
    %v377 = vpop.f32.mrf.mxu0
    %v378 = vpop.f32.mrf.mxu0
    %v379 = vadd.f32 %v303, %v378
    %v380 = vpop.f32.mrf.mxu0
    %381 = vmatprep.mubr.bf16.mxu0 0
    %382 = vmatmul.mubr.bf16.gmra.mxu0 %v316
    %v383 = vpop.f32.mrf.mxu0
    %v384 = vadd.f32 %v304, %v383
    %v385 = vpop.f32.mrf.mxu0
    %v386 = vpop.f32.mrf.mxu0
    %v387 = vadd.f32 %v305, %v386
    %v388 = vpop.f32.mrf.mxu0
    %389 = vmatprep.mubr.bf16.mxu0 0
    %390 = vmatmul.mubr.bf16.gmra.mxu0 %v319
    %v391 = vpop.f32.mrf.mxu0
    %v392 = vadd.f32 %v306, %v391
    %v393 = vpop.f32.mrf.mxu0
    %v394 = vpop.f32.mrf.mxu0
    %v395 = vadd.f32 %v307, %v394
    %v396 = vpop.f32.mrf.mxu0
    %397 = vdwg.mxu0
    %vm398 = vcmask 523264
    %v399 = vsel %vm398, %v368, -inf
    %400 = vmax.xlane.f32.xlu0 %v399
    %v401 = vpop.xlane.xlu0 %400
    %v402 = vsel %vm398, %v371, -inf
    %403 = vmax.xlane.f32.xlu0 %v402
    %v404 = vpop.xlane.xlu0 %403
    %v405 = vsel %vm398, %v376, -inf
    %406 = vmax.xlane.f32.xlu0 %v405
    %v407 = vpop.xlane.xlu0 %406
    %v408 = vsel %vm398, %v379, -inf
    %409 = vmax.xlane.f32.xlu0 %v408
    %v410 = vpop.xlane.xlu0 %409
    %v411 = vsel %vm398, %v384, -inf
    %412 = vmax.xlane.f32.xlu0 %v411
    %v413 = vpop.xlane.xlu0 %412
    %v414 = vsel %vm398, %v387, -inf
    %415 = vmax.xlane.f32.xlu0 %v414
    %v416 = vpop.xlane.xlu0 %415
    %v417 = vsel %vm398, %v392, -inf
    %418 = vmax.xlane.f32.xlu0 %v417
    %v419 = vpop.xlane.xlu0 %418
    %v420 = vsel %vm398, %v395, -inf
    %421 = vmax.xlane.f32.xlu0 %v420
    %v422 = vpop.xlane.xlu0 %421
    %v423 = vsub.f32 %v368, %v401
    %v424 = vsub.f32 %v371, %v404
    %v425 = vsub.f32 %v376, %v407
    %v426 = vsub.f32 %v379, %v410
    %v427 = vsub.f32 %v384, %v413
    %v428 = vsub.f32 %v387, %v416
    %v429 = vsub.f32 %v392, %v419
    %v430 = vsub.f32 %v395, %v422
    %v431 = vmul.f32 %v423, 1.442695
    %v432 = vpow.pop %v431
    %v433 = vmul.f32 %v424, 1.442695
    %v434 = vpow.pop %v433
    %v435 = vmul.f32 %v425, 1.442695
    %v436 = vpow.pop %v435
    %v437 = vmul.f32 %v426, 1.442695
    %v438 = vpow.pop %v437
    %v439 = vmul.f32 %v427, 1.442695
    %v440 = vpow.pop %v439
    %v441 = vmul.f32 %v428, 1.442695
    %v442 = vpow.pop %v441
    %v443 = vmul.f32 %v429, 1.442695
    %v444 = vpow.pop %v443
    %v445 = vmul.f32 %v430, 1.442695
    %v446 = vpow.pop %v445
    %v447 = vsel %vm398, %v432, 0.0
    %448 = vadd.xlane.f32.xlu0 %v447
    %v449 = vpop.xlane.xlu0 %448
    %v450 = vsel %vm398, %v434, 0.0
    %451 = vadd.xlane.f32.xlu0 %v450
    %v452 = vpop.xlane.xlu0 %451
    %v453 = vsel %vm398, %v436, 0.0
    %454 = vadd.xlane.f32.xlu0 %v453
    %v455 = vpop.xlane.xlu0 %454
    %v456 = vsel %vm398, %v438, 0.0
    %457 = vadd.xlane.f32.xlu0 %v456
    %v458 = vpop.xlane.xlu0 %457
    %v459 = vsel %vm398, %v440, 0.0
    %460 = vadd.xlane.f32.xlu0 %v459
    %v461 = vpop.xlane.xlu0 %460
    %v462 = vsel %vm398, %v442, 0.0
    %463 = vadd.xlane.f32.xlu0 %v462
    %v464 = vpop.xlane.xlu0 %463
    %v465 = vsel %vm398, %v444, 0.0
    %466 = vadd.xlane.f32.xlu0 %v465
    %v467 = vpop.xlane.xlu0 %466
    %v468 = vsel %vm398, %v446, 0.0
    %469 = vadd.xlane.f32.xlu0 %v468
    %v470 = vpop.xlane.xlu0 %469
    %v471 = vrcp.pop %v449
    %v472 = vrcp.pop %v452
    %v473 = vrcp.pop %v455
    %v474 = vrcp.pop %v458
    %v475 = vrcp.pop %v461
    %v476 = vrcp.pop %v464
    %v477 = vrcp.pop %v467
    %v478 = vrcp.pop %v470
    %v479 = vmul.f32 %v432, %v471
    %v480 = vmul.f32 %v434, %v472
    %v481 = vmul.f32 %v436, %v473
    %v482 = vmul.f32 %v438, %v474
    %v483 = vmul.f32 %v440, %v475
    %v484 = vmul.f32 %v442, %v476
    %v485 = vmul.f32 %v444, %v477
    %v486 = vmul.f32 %v446, %v478
    %v487 = vpack.c.bf16 %v480, %v479
    %v488 = vpack.c.bf16 %v482, %v481
    %v489 = vpack.c.bf16 %v484, %v483
    %v490 = vpack.c.bf16 %v486, %v485
    %495 = vrot.lane.b32.xlu0 %v296, 96
    %v496 = vpop.permute.xlu0 %495
    %497 = vrot.lane.b32.xlu0 %v297, 96
    %v498 = vpop.permute.xlu0 %497
    %499 = vrot.lane.b32.xlu0 %v298, 96
    %v500 = vpop.permute.xlu0 %499
    %501 = vrot.lane.b32.xlu0 %v299, 96
    %v502 = vpop.permute.xlu0 %501
    %v508 = vsel %vm398, %v487, 0
    %v511 = vsel %vm398, %v488, 0
    %v514 = vsel %vm398, %v489, 0
    %v517 = vsel %vm398, %v490, 0
    %519 = vmatprep.subr.bf16.mxu0 0
    %520 = vmatpush1.bf16.msra.mxu0 0
    %521 = vmatprep.subr.bf16.mxu0 0
    %522 = vmatpush1.bf16.msra.mxu0 0
    %523 = vmatprep.subr.bf16.mxu0 0
    %524 = vmatpush1.bf16.msra.mxu0 0
    %525 = vmatprep.subr.bf16.mxu0 0
    %526 = vmatpush1.bf16.msra.mxu0 0
    %527 = vmatprep.subr.bf16.mxu0 0
    %528 = vmatpush1.bf16.msra.mxu0 %v502
    %529 = vmatprep.subr.bf16.mxu0 0
    %530 = vmatpush1.bf16.msra.mxu0 %v500
    %531 = vmatprep.subr.bf16.mxu0 0
    %532 = vmatpush1.bf16.msra.mxu0 %v498
    %533 = vmatprep.subr.bf16.mxu0 0
    %534 = vmatpush1.bf16.msra.mxu0 %v496
    %535 = vmatprep.subr.bf16.mxu0 0
    %536 = vmatpush2.bf16.msra.mxu0 0
    %537 = vmatprep.subr.bf16.mxu0 0
    %538 = vmatpush2.bf16.msra.mxu0 0
    %539 = vmatprep.subr.bf16.mxu0 0
    %540 = vmatpush2.bf16.msra.mxu0 0
    %541 = vmatprep.subr.bf16.mxu0 0
    %542 = vmatpush2.bf16.msra.mxu0 0
    %543 = vmatprep.subr.bf16.mxu0 0
    %544 = vmatpush2.bf16.msra.mxu0 0
    %545 = vmatprep.subr.bf16.mxu0 0
    %546 = vmatpush2.bf16.msra.mxu0 0
    %547 = vmatprep.subr.bf16.mxu0 0
    %548 = vmatpush2.bf16.msra.mxu0 0
    %549 = vmatprep.subr.bf16.mxu0 0
    %550 = vmatpush2.bf16.msra.mxu0 0
    %551 = vmatprep.mubr.bf16.mxu0 0
    %552 = vmatmul.mubr.bf16.gmra.mxu0 %v508
    %v553 = vpop.f32.mrf.mxu0
    %v554 = vadd.f32 0.0, %v553
    %v555 = vpop.f32.mrf.mxu0
    %v556 = vpop.f32.mrf.mxu0
    %v557 = vadd.f32 0.0, %v556
    %v558 = vpop.f32.mrf.mxu0
    %559 = vmatprep.mubr.bf16.mxu0 0
    %560 = vmatmul.mubr.bf16.gmra.mxu0 %v511
    %v561 = vpop.f32.mrf.mxu0
    %v562 = vadd.f32 0.0, %v561
    %v563 = vpop.f32.mrf.mxu0
    %v564 = vpop.f32.mrf.mxu0
    %v565 = vadd.f32 0.0, %v564
    %v566 = vpop.f32.mrf.mxu0
    %567 = vmatprep.mubr.bf16.mxu0 0
    %568 = vmatmul.mubr.bf16.gmra.mxu0 %v514
    %v569 = vpop.f32.mrf.mxu0
    %v570 = vadd.f32 0.0, %v569
    %v571 = vpop.f32.mrf.mxu0
    %v572 = vpop.f32.mrf.mxu0
    %v573 = vadd.f32 0.0, %v572
    %v574 = vpop.f32.mrf.mxu0
    %575 = vmatprep.mubr.bf16.mxu0 0
    %576 = vmatmul.mubr.bf16.gmra.mxu0 %v517
    %v577 = vpop.f32.mrf.mxu0
    %v578 = vadd.f32 0.0, %v577
    %v579 = vpop.f32.mrf.mxu0
    %v580 = vpop.f32.mrf.mxu0
    %v581 = vadd.f32 0.0, %v580
    %v582 = vpop.f32.mrf.mxu0
    %583 = vdwg.mxu0
    %588 = vrot.lane.b32.xlu0 %v292, 120
    %v589 = vpop.permute.xlu0 %588
    %590 = vrot.lane.b32.xlu0 %v293, 120
    %v591 = vpop.permute.xlu0 %590
    %592 = vrot.lane.b32.xlu0 %v294, 120
    %v593 = vpop.permute.xlu0 %592
    %594 = vrot.lane.b32.xlu0 %v295, 120
    %v595 = vpop.permute.xlu0 %594
    %596 = vrot.lane.b32.xlu0 %v296, 120
    %v597 = vpop.permute.xlu0 %596
    %598 = vrot.lane.b32.xlu0 %v297, 120
    %v599 = vpop.permute.xlu0 %598
    %600 = vrot.lane.b32.xlu0 %v298, 120
    %v601 = vpop.permute.xlu0 %600
    %602 = vrot.lane.b32.xlu0 %v299, 120
    %v603 = vpop.permute.xlu0 %602
    %v605 = vsel %vm308, %v589, 0
    %v608 = vsel %vm308, %v591, 0
    %v611 = vsel %vm308, %v593, 0
    %v614 = vsel %vm308, %v595, 0
    %v617 = vsel %vm308, %v597, 0
    %v620 = vsel %vm308, %v599, 0
    %v623 = vsel %vm308, %v601, 0
    %v626 = vsel %vm308, %v603, 0
    %628 = vmatprep.subr.bf16.mxu0 0
    %629 = vmatpush1.bf16.xpose.msra.mxu0 0
    %630 = vmatprep.subr.bf16.mxu0 0
    %631 = vmatpush1.bf16.xpose.msra.mxu0 0
    %632 = vmatprep.subr.bf16.mxu0 0
    %633 = vmatpush1.bf16.xpose.msra.mxu0 0
    %634 = vmatprep.subr.bf16.mxu0 0
    %635 = vmatpush1.bf16.xpose.msra.mxu0 0
    %636 = vmatprep.subr.bf16.mxu0 0
    %637 = vmatpush1.bf16.xpose.msra.mxu0 %v626
    %638 = vmatprep.subr.bf16.mxu0 0
    %639 = vmatpush1.bf16.xpose.msra.mxu0 %v623
    %640 = vmatprep.subr.bf16.mxu0 0
    %641 = vmatpush1.bf16.xpose.msra.mxu0 %v620
    %642 = vmatprep.subr.bf16.mxu0 0
    %643 = vmatpush1.bf16.xpose.msra.mxu0 %v617
    %644 = vmatprep.subr.bf16.mxu0 0
    %645 = vmatpush2.bf16.xpose.msra.mxu0 0
    %646 = vmatprep.subr.bf16.mxu0 0
    %647 = vmatpush2.bf16.xpose.msra.mxu0 0
    %648 = vmatprep.subr.bf16.mxu0 0
    %649 = vmatpush2.bf16.xpose.msra.mxu0 0
    %650 = vmatprep.subr.bf16.mxu0 0
    %651 = vmatpush2.bf16.xpose.msra.mxu0 0
    %652 = vmatprep.subr.bf16.mxu0 0
    %653 = vmatpush2.bf16.xpose.msra.mxu0 0
    %654 = vmatprep.subr.bf16.mxu0 0
    %655 = vmatpush2.bf16.xpose.msra.mxu0 0
    %656 = vmatprep.subr.bf16.mxu0 0
    %657 = vmatpush2.bf16.xpose.msra.mxu0 0
    %658 = vmatprep.subr.bf16.mxu0 0
    %659 = vmatpush2.bf16.xpose.msra.mxu0 0
    %660 = vmatprep.mubr.bf16.mxu0 0
    %661 = vmatmul.mubr.bf16.gmra.mxu0 %v605
    %v662 = vpop.f32.mrf.mxu0
    %v663 = vadd.f32 %v300, %v662
    %v664 = vpop.f32.mrf.mxu0
    %v665 = vpop.f32.mrf.mxu0
    %v666 = vadd.f32 %v301, %v665
    %v667 = vpop.f32.mrf.mxu0
    %668 = vmatprep.mubr.bf16.mxu0 0
    %669 = vmatmul.mubr.bf16.gmra.mxu0 %v608
    %v670 = vpop.f32.mrf.mxu0
    %v671 = vadd.f32 %v302, %v670
    %v672 = vpop.f32.mrf.mxu0
    %v673 = vpop.f32.mrf.mxu0
    %v674 = vadd.f32 %v303, %v673
    %v675 = vpop.f32.mrf.mxu0
    %676 = vmatprep.mubr.bf16.mxu0 0
    %677 = vmatmul.mubr.bf16.gmra.mxu0 %v611
    %v678 = vpop.f32.mrf.mxu0
    %v679 = vadd.f32 %v304, %v678
    %v680 = vpop.f32.mrf.mxu0
    %v681 = vpop.f32.mrf.mxu0
    %v682 = vadd.f32 %v305, %v681
    %v683 = vpop.f32.mrf.mxu0
    %684 = vmatprep.mubr.bf16.mxu0 0
    %685 = vmatmul.mubr.bf16.gmra.mxu0 %v614
    %v686 = vpop.f32.mrf.mxu0
    %v687 = vadd.f32 %v306, %v686
    %v688 = vpop.f32.mrf.mxu0
    %v689 = vpop.f32.mrf.mxu0
    %v690 = vadd.f32 %v307, %v689
    %v691 = vpop.f32.mrf.mxu0
    %692 = vdwg.mxu0
    %v693 = vsel %vm398, %v663, -inf
    %694 = vmax.xlane.f32.xlu0 %v693
    %v695 = vpop.xlane.xlu0 %694
    %v696 = vsel %vm398, %v666, -inf
    %697 = vmax.xlane.f32.xlu0 %v696
    %v698 = vpop.xlane.xlu0 %697
    %v699 = vsel %vm398, %v671, -inf
    %700 = vmax.xlane.f32.xlu0 %v699
    %v701 = vpop.xlane.xlu0 %700
    %v702 = vsel %vm398, %v674, -inf
    %703 = vmax.xlane.f32.xlu0 %v702
    %v704 = vpop.xlane.xlu0 %703
    %v705 = vsel %vm398, %v679, -inf
    %706 = vmax.xlane.f32.xlu0 %v705
    %v707 = vpop.xlane.xlu0 %706
    %v708 = vsel %vm398, %v682, -inf
    %709 = vmax.xlane.f32.xlu0 %v708
    %v710 = vpop.xlane.xlu0 %709
    %v711 = vsel %vm398, %v687, -inf
    %712 = vmax.xlane.f32.xlu0 %v711
    %v713 = vpop.xlane.xlu0 %712
    %v714 = vsel %vm398, %v690, -inf
    %715 = vmax.xlane.f32.xlu0 %v714
    %v716 = vpop.xlane.xlu0 %715
    %v717 = vsub.f32 %v663, %v695
    %v718 = vsub.f32 %v666, %v698
    %v719 = vsub.f32 %v671, %v701
    %v720 = vsub.f32 %v674, %v704
    %v721 = vsub.f32 %v679, %v707
    %v722 = vsub.f32 %v682, %v710
    %v723 = vsub.f32 %v687, %v713
    %v724 = vsub.f32 %v690, %v716
    %v725 = vmul.f32 %v717, 1.442695
    %v726 = vpow.pop %v725
    %v727 = vmul.f32 %v718, 1.442695
    %v728 = vpow.pop %v727
    %v729 = vmul.f32 %v719, 1.442695
    %v730 = vpow.pop %v729
    %v731 = vmul.f32 %v720, 1.442695
    %v732 = vpow.pop %v731
    %v733 = vmul.f32 %v721, 1.442695
    %v734 = vpow.pop %v733
    %v735 = vmul.f32 %v722, 1.442695
    %v736 = vpow.pop %v735
    %v737 = vmul.f32 %v723, 1.442695
    %v738 = vpow.pop %v737
    %v739 = vmul.f32 %v724, 1.442695
    %v740 = vpow.pop %v739
    %v741 = vsel %vm398, %v726, 0.0
    %742 = vadd.xlane.f32.xlu0 %v741
    %v743 = vpop.xlane.xlu0 %742
    %v744 = vsel %vm398, %v728, 0.0
    %745 = vadd.xlane.f32.xlu0 %v744
    %v746 = vpop.xlane.xlu0 %745
    %v747 = vsel %vm398, %v730, 0.0
    %748 = vadd.xlane.f32.xlu0 %v747
    %v749 = vpop.xlane.xlu0 %748
    %v750 = vsel %vm398, %v732, 0.0
    %751 = vadd.xlane.f32.xlu0 %v750
    %v752 = vpop.xlane.xlu0 %751
    %v753 = vsel %vm398, %v734, 0.0
    %754 = vadd.xlane.f32.xlu0 %v753
    %v755 = vpop.xlane.xlu0 %754
    %v756 = vsel %vm398, %v736, 0.0
    %757 = vadd.xlane.f32.xlu0 %v756
    %v758 = vpop.xlane.xlu0 %757
    %v759 = vsel %vm398, %v738, 0.0
    %760 = vadd.xlane.f32.xlu0 %v759
    %v761 = vpop.xlane.xlu0 %760
    %v762 = vsel %vm398, %v740, 0.0
    %763 = vadd.xlane.f32.xlu0 %v762
    %v764 = vpop.xlane.xlu0 %763
    %v765 = vrcp.pop %v743
    %v766 = vrcp.pop %v746
    %v767 = vrcp.pop %v749
    %v768 = vrcp.pop %v752
    %v769 = vrcp.pop %v755
    %v770 = vrcp.pop %v758
    %v771 = vrcp.pop %v761
    %v772 = vrcp.pop %v764
    %v773 = vmul.f32 %v726, %v765
    %v774 = vmul.f32 %v728, %v766
    %v775 = vmul.f32 %v730, %v767
    %v776 = vmul.f32 %v732, %v768
    %v777 = vmul.f32 %v734, %v769
    %v778 = vmul.f32 %v736, %v770
    %v779 = vmul.f32 %v738, %v771
    %v780 = vmul.f32 %v740, %v772
    %v781 = vpack.c.bf16 %v774, %v773
    %v782 = vpack.c.bf16 %v776, %v775
    %v783 = vpack.c.bf16 %v778, %v777
    %v784 = vpack.c.bf16 %v780, %v779
    %785 = vrot.lane.b32.xlu0 %v296, 88
    %v786 = vpop.permute.xlu0 %785
    %787 = vrot.lane.b32.xlu0 %v297, 88
    %v788 = vpop.permute.xlu0 %787
    %789 = vrot.lane.b32.xlu0 %v298, 88
    %v790 = vpop.permute.xlu0 %789
    %791 = vrot.lane.b32.xlu0 %v299, 88
    %v792 = vpop.permute.xlu0 %791
    %v798 = vsel %vm398, %v781, 0
    %v801 = vsel %vm398, %v782, 0
    %v804 = vsel %vm398, %v783, 0
    %v807 = vsel %vm398, %v784, 0
    %809 = vmatprep.subr.bf16.mxu0 0
    %810 = vmatpush1.bf16.msra.mxu0 0
    %811 = vmatprep.subr.bf16.mxu0 0
    %812 = vmatpush1.bf16.msra.mxu0 0
    %813 = vmatprep.subr.bf16.mxu0 0
    %814 = vmatpush1.bf16.msra.mxu0 0
    %815 = vmatprep.subr.bf16.mxu0 0
    %816 = vmatpush1.bf16.msra.mxu0 0
    %817 = vmatprep.subr.bf16.mxu0 0
    %818 = vmatpush1.bf16.msra.mxu0 %v792
    %819 = vmatprep.subr.bf16.mxu0 0
    %820 = vmatpush1.bf16.msra.mxu0 %v790
    %821 = vmatprep.subr.bf16.mxu0 0
    %822 = vmatpush1.bf16.msra.mxu0 %v788
    %823 = vmatprep.subr.bf16.mxu0 0
    %824 = vmatpush1.bf16.msra.mxu0 %v786
    %825 = vmatprep.subr.bf16.mxu0 0
    %826 = vmatpush2.bf16.msra.mxu0 0
    %827 = vmatprep.subr.bf16.mxu0 0
    %828 = vmatpush2.bf16.msra.mxu0 0
    %829 = vmatprep.subr.bf16.mxu0 0
    %830 = vmatpush2.bf16.msra.mxu0 0
    %831 = vmatprep.subr.bf16.mxu0 0
    %832 = vmatpush2.bf16.msra.mxu0 0
    %833 = vmatprep.subr.bf16.mxu0 0
    %834 = vmatpush2.bf16.msra.mxu0 0
    %835 = vmatprep.subr.bf16.mxu0 0
    %836 = vmatpush2.bf16.msra.mxu0 0
    %837 = vmatprep.subr.bf16.mxu0 0
    %838 = vmatpush2.bf16.msra.mxu0 0
    %839 = vmatprep.subr.bf16.mxu0 0
    %840 = vmatpush2.bf16.msra.mxu0 0
    %841 = vmatprep.mubr.bf16.mxu0 0
    %842 = vmatmul.mubr.bf16.gmra.mxu0 %v798
    %v843 = vpop.f32.mrf.mxu0
    %v844 = vadd.f32 0.0, %v843
    %v845 = vpop.f32.mrf.mxu0
    %v846 = vpop.f32.mrf.mxu0
    %v847 = vadd.f32 0.0, %v846
    %v848 = vpop.f32.mrf.mxu0
    %849 = vmatprep.mubr.bf16.mxu0 0
    %850 = vmatmul.mubr.bf16.gmra.mxu0 %v801
    %v851 = vpop.f32.mrf.mxu0
    %v852 = vadd.f32 0.0, %v851
    %v853 = vpop.f32.mrf.mxu0
    %v854 = vpop.f32.mrf.mxu0
    %v855 = vadd.f32 0.0, %v854
    %v856 = vpop.f32.mrf.mxu0
    %857 = vmatprep.mubr.bf16.mxu0 0
    %858 = vmatmul.mubr.bf16.gmra.mxu0 %v804
    %v859 = vpop.f32.mrf.mxu0
    %v860 = vadd.f32 0.0, %v859
    %v861 = vpop.f32.mrf.mxu0
    %v862 = vpop.f32.mrf.mxu0
    %v863 = vadd.f32 0.0, %v862
    %v864 = vpop.f32.mrf.mxu0
    %865 = vmatprep.mubr.bf16.mxu0 0
    %866 = vmatmul.mubr.bf16.gmra.mxu0 %v807
    %v867 = vpop.f32.mrf.mxu0
    %v868 = vadd.f32 0.0, %v867
    %v869 = vpop.f32.mrf.mxu0
    %v870 = vpop.f32.mrf.mxu0
    %v871 = vadd.f32 0.0, %v870
    %v872 = vpop.f32.mrf.mxu0
    %873 = vdwg.mxu0
    %874 = vrot.lane.b32.xlu0 %v292, 112
    %v875 = vpop.permute.xlu0 %874
    %876 = vrot.lane.b32.xlu0 %v293, 112
    %v877 = vpop.permute.xlu0 %876
    %878 = vrot.lane.b32.xlu0 %v294, 112
    %v879 = vpop.permute.xlu0 %878
    %880 = vrot.lane.b32.xlu0 %v295, 112
    %v881 = vpop.permute.xlu0 %880
    %882 = vrot.lane.b32.xlu0 %v296, 112
    %v883 = vpop.permute.xlu0 %882
    %884 = vrot.lane.b32.xlu0 %v297, 112
    %v885 = vpop.permute.xlu0 %884
    %886 = vrot.lane.b32.xlu0 %v298, 112
    %v887 = vpop.permute.xlu0 %886
    %888 = vrot.lane.b32.xlu0 %v299, 112
    %v889 = vpop.permute.xlu0 %888
    %v891 = vsel %vm308, %v875, 0
    %v894 = vsel %vm308, %v877, 0
    %v897 = vsel %vm308, %v879, 0
    %v900 = vsel %vm308, %v881, 0
    %v903 = vsel %vm308, %v883, 0
    %v906 = vsel %vm308, %v885, 0
    %v909 = vsel %vm308, %v887, 0
    %v912 = vsel %vm308, %v889, 0
    %914 = vmatprep.subr.bf16.mxu0 0
    %915 = vmatpush1.bf16.xpose.msra.mxu0 0
    %916 = vmatprep.subr.bf16.mxu0 0
    %917 = vmatpush1.bf16.xpose.msra.mxu0 0
    %918 = vmatprep.subr.bf16.mxu0 0
    %919 = vmatpush1.bf16.xpose.msra.mxu0 0
    %920 = vmatprep.subr.bf16.mxu0 0
    %921 = vmatpush1.bf16.xpose.msra.mxu0 0
    %922 = vmatprep.subr.bf16.mxu0 0
    %923 = vmatpush1.bf16.xpose.msra.mxu0 %v912
    %924 = vmatprep.subr.bf16.mxu0 0
    %925 = vmatpush1.bf16.xpose.msra.mxu0 %v909
    %926 = vmatprep.subr.bf16.mxu0 0
    %927 = vmatpush1.bf16.xpose.msra.mxu0 %v906
    %928 = vmatprep.subr.bf16.mxu0 0
    %929 = vmatpush1.bf16.xpose.msra.mxu0 %v903
    %930 = vmatprep.subr.bf16.mxu0 0
    %931 = vmatpush2.bf16.xpose.msra.mxu0 0
    %932 = vmatprep.subr.bf16.mxu0 0
    %933 = vmatpush2.bf16.xpose.msra.mxu0 0
    %934 = vmatprep.subr.bf16.mxu0 0
    %935 = vmatpush2.bf16.xpose.msra.mxu0 0
    %936 = vmatprep.subr.bf16.mxu0 0
    %937 = vmatpush2.bf16.xpose.msra.mxu0 0
    %938 = vmatprep.subr.bf16.mxu0 0
    %939 = vmatpush2.bf16.xpose.msra.mxu0 0
    %940 = vmatprep.subr.bf16.mxu0 0
    %941 = vmatpush2.bf16.xpose.msra.mxu0 0
    %942 = vmatprep.subr.bf16.mxu0 0
    %943 = vmatpush2.bf16.xpose.msra.mxu0 0
    %944 = vmatprep.subr.bf16.mxu0 0
    %945 = vmatpush2.bf16.xpose.msra.mxu0 0
    %946 = vmatprep.mubr.bf16.mxu0 0
    %947 = vmatmul.mubr.bf16.gmra.mxu0 %v891
    %v948 = vpop.f32.mrf.mxu0
    %v949 = vadd.f32 %v300, %v948
    %v950 = vpop.f32.mrf.mxu0
    %v951 = vpop.f32.mrf.mxu0
    %v952 = vadd.f32 %v301, %v951
    %v953 = vpop.f32.mrf.mxu0
    %954 = vmatprep.mubr.bf16.mxu0 0
    %955 = vmatmul.mubr.bf16.gmra.mxu0 %v894
    %v956 = vpop.f32.mrf.mxu0
    %v957 = vadd.f32 %v302, %v956
    %v958 = vpop.f32.mrf.mxu0
    %v959 = vpop.f32.mrf.mxu0
    %v960 = vadd.f32 %v303, %v959
    %v961 = vpop.f32.mrf.mxu0
    %962 = vmatprep.mubr.bf16.mxu0 0
    %963 = vmatmul.mubr.bf16.gmra.mxu0 %v897
    %v964 = vpop.f32.mrf.mxu0
    %v965 = vadd.f32 %v304, %v964
    %v966 = vpop.f32.mrf.mxu0
    %v967 = vpop.f32.mrf.mxu0
    %v968 = vadd.f32 %v305, %v967
    %v969 = vpop.f32.mrf.mxu0
    %970 = vmatprep.mubr.bf16.mxu0 0
    %971 = vmatmul.mubr.bf16.gmra.mxu0 %v900
    %v972 = vpop.f32.mrf.mxu0
    %v973 = vadd.f32 %v306, %v972
    %v974 = vpop.f32.mrf.mxu0
    %v975 = vpop.f32.mrf.mxu0
    %v976 = vadd.f32 %v307, %v975
    %v977 = vpop.f32.mrf.mxu0
    %978 = vdwg.mxu0
    %v979 = vsel %vm398, %v949, -inf
    %980 = vmax.xlane.f32.xlu0 %v979
    %v981 = vpop.xlane.xlu0 %980
    %v982 = vsel %vm398, %v952, -inf
    %983 = vmax.xlane.f32.xlu0 %v982
    %v984 = vpop.xlane.xlu0 %983
    %v985 = vsel %vm398, %v957, -inf
    %986 = vmax.xlane.f32.xlu0 %v985
    %v987 = vpop.xlane.xlu0 %986
    %v988 = vsel %vm398, %v960, -inf
    %989 = vmax.xlane.f32.xlu0 %v988
    %v990 = vpop.xlane.xlu0 %989
    %v991 = vsel %vm398, %v965, -inf
    %992 = vmax.xlane.f32.xlu0 %v991
    %v993 = vpop.xlane.xlu0 %992
    %v994 = vsel %vm398, %v968, -inf
    %995 = vmax.xlane.f32.xlu0 %v994
    %v996 = vpop.xlane.xlu0 %995
    %v997 = vsel %vm398, %v973, -inf
    %998 = vmax.xlane.f32.xlu0 %v997
    %v999 = vpop.xlane.xlu0 %998
    %v1000 = vsel %vm398, %v976, -inf
    %1001 = vmax.xlane.f32.xlu0 %v1000
    %v1002 = vpop.xlane.xlu0 %1001
    %v1003 = vsub.f32 %v949, %v981
    %v1004 = vsub.f32 %v952, %v984
    %v1005 = vsub.f32 %v957, %v987
    %v1006 = vsub.f32 %v960, %v990
    %v1007 = vsub.f32 %v965, %v993
    %v1008 = vsub.f32 %v968, %v996
    %v1009 = vsub.f32 %v973, %v999
    %v1010 = vsub.f32 %v976, %v1002
    %v1011 = vmul.f32 %v1003, 1.442695
    %v1012 = vpow.pop %v1011
    %v1013 = vmul.f32 %v1004, 1.442695
    %v1014 = vpow.pop %v1013
    %v1015 = vmul.f32 %v1005, 1.442695
    %v1016 = vpow.pop %v1015
    %v1017 = vmul.f32 %v1006, 1.442695
    %v1018 = vpow.pop %v1017
    %v1019 = vmul.f32 %v1007, 1.442695
    %v1020 = vpow.pop %v1019
    %v1021 = vmul.f32 %v1008, 1.442695
    %v1022 = vpow.pop %v1021
    %v1023 = vmul.f32 %v1009, 1.442695
    %v1024 = vpow.pop %v1023
    %v1025 = vmul.f32 %v1010, 1.442695
    %v1026 = vpow.pop %v1025
    %v1027 = vsel %vm398, %v1012, 0.0
    %1028 = vadd.xlane.f32.xlu0 %v1027
    %v1029 = vpop.xlane.xlu0 %1028
    %v1030 = vsel %vm398, %v1014, 0.0
    %1031 = vadd.xlane.f32.xlu0 %v1030
    %v1032 = vpop.xlane.xlu0 %1031
    %v1033 = vsel %vm398, %v1016, 0.0
    %1034 = vadd.xlane.f32.xlu0 %v1033
    %v1035 = vpop.xlane.xlu0 %1034
    %v1036 = vsel %vm398, %v1018, 0.0
    %1037 = vadd.xlane.f32.xlu0 %v1036
    %v1038 = vpop.xlane.xlu0 %1037
    %v1039 = vsel %vm398, %v1020, 0.0
    %1040 = vadd.xlane.f32.xlu0 %v1039
    %v1041 = vpop.xlane.xlu0 %1040
    %v1042 = vsel %vm398, %v1022, 0.0
    %1043 = vadd.xlane.f32.xlu0 %v1042
    %v1044 = vpop.xlane.xlu0 %1043
    %v1045 = vsel %vm398, %v1024, 0.0
    %1046 = vadd.xlane.f32.xlu0 %v1045
    %v1047 = vpop.xlane.xlu0 %1046
    %v1048 = vsel %vm398, %v1026, 0.0
    %1049 = vadd.xlane.f32.xlu0 %v1048
    %v1050 = vpop.xlane.xlu0 %1049
    %v1051 = vrcp.pop %v1029
    %v1052 = vrcp.pop %v1032
    %v1053 = vrcp.pop %v1035
    %v1054 = vrcp.pop %v1038
    %v1055 = vrcp.pop %v1041
    %v1056 = vrcp.pop %v1044
    %v1057 = vrcp.pop %v1047
    %v1058 = vrcp.pop %v1050
    %v1059 = vmul.f32 %v1012, %v1051
    %v1060 = vmul.f32 %v1014, %v1052
    %v1061 = vmul.f32 %v1016, %v1053
    %v1062 = vmul.f32 %v1018, %v1054
    %v1063 = vmul.f32 %v1020, %v1055
    %v1064 = vmul.f32 %v1022, %v1056
    %v1065 = vmul.f32 %v1024, %v1057
    %v1066 = vmul.f32 %v1026, %v1058
    %v1067 = vpack.c.bf16 %v1060, %v1059
    %v1068 = vpack.c.bf16 %v1062, %v1061
    %v1069 = vpack.c.bf16 %v1064, %v1063
    %v1070 = vpack.c.bf16 %v1066, %v1065
    %1071 = vrot.lane.b32.xlu0 %v296, 80
    %v1072 = vpop.permute.xlu0 %1071
    %1073 = vrot.lane.b32.xlu0 %v297, 80
    %v1074 = vpop.permute.xlu0 %1073
    %1075 = vrot.lane.b32.xlu0 %v298, 80
    %v1076 = vpop.permute.xlu0 %1075
    %1077 = vrot.lane.b32.xlu0 %v299, 80
    %v1078 = vpop.permute.xlu0 %1077
    %v1084 = vsel %vm398, %v1067, 0
    %v1087 = vsel %vm398, %v1068, 0
    %v1090 = vsel %vm398, %v1069, 0
    %v1093 = vsel %vm398, %v1070, 0
    %1095 = vmatprep.subr.bf16.mxu0 0
    %1096 = vmatpush1.bf16.msra.mxu0 0
    %1097 = vmatprep.subr.bf16.mxu0 0
    %1098 = vmatpush1.bf16.msra.mxu0 0
    %1099 = vmatprep.subr.bf16.mxu0 0
    %1100 = vmatpush1.bf16.msra.mxu0 0
    %1101 = vmatprep.subr.bf16.mxu0 0
    %1102 = vmatpush1.bf16.msra.mxu0 0
    %1103 = vmatprep.subr.bf16.mxu0 0
    %1104 = vmatpush1.bf16.msra.mxu0 %v1078
    %1105 = vmatprep.subr.bf16.mxu0 0
    %1106 = vmatpush1.bf16.msra.mxu0 %v1076
    %1107 = vmatprep.subr.bf16.mxu0 0
    %1108 = vmatpush1.bf16.msra.mxu0 %v1074
    %1109 = vmatprep.subr.bf16.mxu0 0
    %1110 = vmatpush1.bf16.msra.mxu0 %v1072
    %1111 = vmatprep.subr.bf16.mxu0 0
    %1112 = vmatpush2.bf16.msra.mxu0 0
    %1113 = vmatprep.subr.bf16.mxu0 0
    %1114 = vmatpush2.bf16.msra.mxu0 0
    %1115 = vmatprep.subr.bf16.mxu0 0
    %1116 = vmatpush2.bf16.msra.mxu0 0
    %1117 = vmatprep.subr.bf16.mxu0 0
    %1118 = vmatpush2.bf16.msra.mxu0 0
    %1119 = vmatprep.subr.bf16.mxu0 0
    %1120 = vmatpush2.bf16.msra.mxu0 0
    %1121 = vmatprep.subr.bf16.mxu0 0
    %1122 = vmatpush2.bf16.msra.mxu0 0
    %1123 = vmatprep.subr.bf16.mxu0 0
    %1124 = vmatpush2.bf16.msra.mxu0 0
    %1125 = vmatprep.subr.bf16.mxu0 0
    %1126 = vmatpush2.bf16.msra.mxu0 0
    %1127 = vmatprep.mubr.bf16.mxu0 0
    %1128 = vmatmul.mubr.bf16.gmra.mxu0 %v1084
    %v1129 = vpop.f32.mrf.mxu0
    %v1130 = vadd.f32 0.0, %v1129
    %v1131 = vpop.f32.mrf.mxu0
    %v1132 = vpop.f32.mrf.mxu0
    %v1133 = vadd.f32 0.0, %v1132
    %v1134 = vpop.f32.mrf.mxu0
    %1135 = vmatprep.mubr.bf16.mxu0 0
    %1136 = vmatmul.mubr.bf16.gmra.mxu0 %v1087
    %v1137 = vpop.f32.mrf.mxu0
    %v1138 = vadd.f32 0.0, %v1137
    %v1139 = vpop.f32.mrf.mxu0
    %v1140 = vpop.f32.mrf.mxu0
    %v1141 = vadd.f32 0.0, %v1140
    %v1142 = vpop.f32.mrf.mxu0
    %1143 = vmatprep.mubr.bf16.mxu0 0
    %1144 = vmatmul.mubr.bf16.gmra.mxu0 %v1090
    %v1145 = vpop.f32.mrf.mxu0
    %v1146 = vadd.f32 0.0, %v1145
    %v1147 = vpop.f32.mrf.mxu0
    %v1148 = vpop.f32.mrf.mxu0
    %v1149 = vadd.f32 0.0, %v1148
    %v1150 = vpop.f32.mrf.mxu0
    %1151 = vmatprep.mubr.bf16.mxu0 0
    %1152 = vmatmul.mubr.bf16.gmra.mxu0 %v1093
    %v1153 = vpop.f32.mrf.mxu0
    %v1154 = vadd.f32 0.0, %v1153
    %v1155 = vpop.f32.mrf.mxu0
    %v1156 = vpop.f32.mrf.mxu0
    %v1157 = vadd.f32 0.0, %v1156
    %v1158 = vpop.f32.mrf.mxu0
    %1159 = vdwg.mxu0
    %1160 = vrot.lane.b32.xlu0 %v292, 104
    %v1161 = vpop.permute.xlu0 %1160
    %1162 = vrot.lane.b32.xlu0 %v293, 104
    %v1163 = vpop.permute.xlu0 %1162
    %1164 = vrot.lane.b32.xlu0 %v294, 104
    %v1165 = vpop.permute.xlu0 %1164
    %1166 = vrot.lane.b32.xlu0 %v295, 104
    %v1167 = vpop.permute.xlu0 %1166
    %1168 = vrot.lane.b32.xlu0 %v296, 104
    %v1169 = vpop.permute.xlu0 %1168
    %1170 = vrot.lane.b32.xlu0 %v297, 104
    %v1171 = vpop.permute.xlu0 %1170
    %1172 = vrot.lane.b32.xlu0 %v298, 104
    %v1173 = vpop.permute.xlu0 %1172
    %1174 = vrot.lane.b32.xlu0 %v299, 104
    %v1175 = vpop.permute.xlu0 %1174
    %v1177 = vsel %vm308, %v1161, 0
    %v1180 = vsel %vm308, %v1163, 0
    %v1183 = vsel %vm308, %v1165, 0
    %v1186 = vsel %vm308, %v1167, 0
    %v1189 = vsel %vm308, %v1169, 0
    %v1192 = vsel %vm308, %v1171, 0
    %v1195 = vsel %vm308, %v1173, 0
    %v1198 = vsel %vm308, %v1175, 0
    %1200 = vmatprep.subr.bf16.mxu0 0
    %1201 = vmatpush1.bf16.xpose.msra.mxu0 0
    %1202 = vmatprep.subr.bf16.mxu0 0
    %1203 = vmatpush1.bf16.xpose.msra.mxu0 0
    %1204 = vmatprep.subr.bf16.mxu0 0
    %1205 = vmatpush1.bf16.xpose.msra.mxu0 0
    %1206 = vmatprep.subr.bf16.mxu0 0
    %1207 = vmatpush1.bf16.xpose.msra.mxu0 0
    %1208 = vmatprep.subr.bf16.mxu0 0
    %1209 = vmatpush1.bf16.xpose.msra.mxu0 %v1198
    %1210 = vmatprep.subr.bf16.mxu0 0
    %1211 = vmatpush1.bf16.xpose.msra.mxu0 %v1195
    %1212 = vmatprep.subr.bf16.mxu0 0
    %1213 = vmatpush1.bf16.xpose.msra.mxu0 %v1192
    %1214 = vmatprep.subr.bf16.mxu0 0
    %1215 = vmatpush1.bf16.xpose.msra.mxu0 %v1189
    %1216 = vmatprep.subr.bf16.mxu0 0
    %1217 = vmatpush2.bf16.xpose.msra.mxu0 0
    %1218 = vmatprep.subr.bf16.mxu0 0
    %1219 = vmatpush2.bf16.xpose.msra.mxu0 0
    %1220 = vmatprep.subr.bf16.mxu0 0
    %1221 = vmatpush2.bf16.xpose.msra.mxu0 0
    %1222 = vmatprep.subr.bf16.mxu0 0
    %1223 = vmatpush2.bf16.xpose.msra.mxu0 0
    %1224 = vmatprep.subr.bf16.mxu0 0
    %1225 = vmatpush2.bf16.xpose.msra.mxu0 0
    %1226 = vmatprep.subr.bf16.mxu0 0
    %1227 = vmatpush2.bf16.xpose.msra.mxu0 0
    %1228 = vmatprep.subr.bf16.mxu0 0
    %1229 = vmatpush2.bf16.xpose.msra.mxu0 0
    %1230 = vmatprep.subr.bf16.mxu0 0
    %1231 = vmatpush2.bf16.xpose.msra.mxu0 0
    %1232 = vmatprep.mubr.bf16.mxu0 0
    %1233 = vmatmul.mubr.bf16.gmra.mxu0 %v1177
    %v1234 = vpop.f32.mrf.mxu0
    %v1235 = vadd.f32 %v300, %v1234
    %v1236 = vpop.f32.mrf.mxu0
    %v1237 = vpop.f32.mrf.mxu0
    %v1238 = vadd.f32 %v301, %v1237
    %v1239 = vpop.f32.mrf.mxu0
    %1240 = vmatprep.mubr.bf16.mxu0 0
    %1241 = vmatmul.mubr.bf16.gmra.mxu0 %v1180
    %v1242 = vpop.f32.mrf.mxu0
    %v1243 = vadd.f32 %v302, %v1242
    %v1244 = vpop.f32.mrf.mxu0
    %v1245 = vpop.f32.mrf.mxu0
    %v1246 = vadd.f32 %v303, %v1245
    %v1247 = vpop.f32.mrf.mxu0
    %1248 = vmatprep.mubr.bf16.mxu0 0
    %1249 = vmatmul.mubr.bf16.gmra.mxu0 %v1183
    %v1250 = vpop.f32.mrf.mxu0
    %v1251 = vadd.f32 %v304, %v1250
    %v1252 = vpop.f32.mrf.mxu0
    %v1253 = vpop.f32.mrf.mxu0
    %v1254 = vadd.f32 %v305, %v1253
    %v1255 = vpop.f32.mrf.mxu0
    %1256 = vmatprep.mubr.bf16.mxu0 0
    %1257 = vmatmul.mubr.bf16.gmra.mxu0 %v1186
    %v1258 = vpop.f32.mrf.mxu0
    %v1259 = vadd.f32 %v306, %v1258
    %v1260 = vpop.f32.mrf.mxu0
    %v1261 = vpop.f32.mrf.mxu0
    %v1262 = vadd.f32 %v307, %v1261
    %v1263 = vpop.f32.mrf.mxu0
    %1264 = vdwg.mxu0
    %v1265 = vsel %vm398, %v1235, -inf
    %1266 = vmax.xlane.f32.xlu0 %v1265
    %v1267 = vpop.xlane.xlu0 %1266
    %v1268 = vsel %vm398, %v1238, -inf
    %1269 = vmax.xlane.f32.xlu0 %v1268
    %v1270 = vpop.xlane.xlu0 %1269
    %v1271 = vsel %vm398, %v1243, -inf
    %1272 = vmax.xlane.f32.xlu0 %v1271
    %v1273 = vpop.xlane.xlu0 %1272
    %v1274 = vsel %vm398, %v1246, -inf
    %1275 = vmax.xlane.f32.xlu0 %v1274
    %v1276 = vpop.xlane.xlu0 %1275
    %v1277 = vsel %vm398, %v1251, -inf
    %1278 = vmax.xlane.f32.xlu0 %v1277
    %v1279 = vpop.xlane.xlu0 %1278
    %v1280 = vsel %vm398, %v1254, -inf
    %1281 = vmax.xlane.f32.xlu0 %v1280
    %v1282 = vpop.xlane.xlu0 %1281
    %v1283 = vsel %vm398, %v1259, -inf
    %1284 = vmax.xlane.f32.xlu0 %v1283
    %v1285 = vpop.xlane.xlu0 %1284
    %v1286 = vsel %vm398, %v1262, -inf
    %1287 = vmax.xlane.f32.xlu0 %v1286
    %v1288 = vpop.xlane.xlu0 %1287
    %v1289 = vsub.f32 %v1235, %v1267
    %v1290 = vsub.f32 %v1238, %v1270
    %v1291 = vsub.f32 %v1243, %v1273
    %v1292 = vsub.f32 %v1246, %v1276
    %v1293 = vsub.f32 %v1251, %v1279
    %v1294 = vsub.f32 %v1254, %v1282
    %v1295 = vsub.f32 %v1259, %v1285
    %v1296 = vsub.f32 %v1262, %v1288
    %v1297 = vmul.f32 %v1289, 1.442695
    %v1298 = vpow.pop %v1297
    %v1299 = vmul.f32 %v1290, 1.442695
    %v1300 = vpow.pop %v1299
    %v1301 = vmul.f32 %v1291, 1.442695
    %v1302 = vpow.pop %v1301
    %v1303 = vmul.f32 %v1292, 1.442695
    %v1304 = vpow.pop %v1303
    %v1305 = vmul.f32 %v1293, 1.442695
    %v1306 = vpow.pop %v1305
    %v1307 = vmul.f32 %v1294, 1.442695
    %v1308 = vpow.pop %v1307
    %v1309 = vmul.f32 %v1295, 1.442695
    %v1310 = vpow.pop %v1309
    %v1311 = vmul.f32 %v1296, 1.442695
    %v1312 = vpow.pop %v1311
    %v1313 = vsel %vm398, %v1298, 0.0
    %1314 = vadd.xlane.f32.xlu0 %v1313
    %v1315 = vpop.xlane.xlu0 %1314
    %v1316 = vsel %vm398, %v1300, 0.0
    %1317 = vadd.xlane.f32.xlu0 %v1316
    %v1318 = vpop.xlane.xlu0 %1317
    %v1319 = vsel %vm398, %v1302, 0.0
    %1320 = vadd.xlane.f32.xlu0 %v1319
    %v1321 = vpop.xlane.xlu0 %1320
    %v1322 = vsel %vm398, %v1304, 0.0
    %1323 = vadd.xlane.f32.xlu0 %v1322
    %v1324 = vpop.xlane.xlu0 %1323
    %v1325 = vsel %vm398, %v1306, 0.0
    %1326 = vadd.xlane.f32.xlu0 %v1325
    %v1327 = vpop.xlane.xlu0 %1326
    %v1328 = vsel %vm398, %v1308, 0.0
    %1329 = vadd.xlane.f32.xlu0 %v1328
    %v1330 = vpop.xlane.xlu0 %1329
    %v1331 = vsel %vm398, %v1310, 0.0
    %1332 = vadd.xlane.f32.xlu0 %v1331
    %v1333 = vpop.xlane.xlu0 %1332
    %v1334 = vsel %vm398, %v1312, 0.0
    %1335 = vadd.xlane.f32.xlu0 %v1334
    %v1336 = vpop.xlane.xlu0 %1335
    %v1337 = vrcp.pop %v1315
    %v1338 = vrcp.pop %v1318
    %v1339 = vrcp.pop %v1321
    %v1340 = vrcp.pop %v1324
    %v1341 = vrcp.pop %v1327
    %v1342 = vrcp.pop %v1330
    %v1343 = vrcp.pop %v1333
    %v1344 = vrcp.pop %v1336
    %v1345 = vmul.f32 %v1298, %v1337
    %v1346 = vmul.f32 %v1300, %v1338
    %v1347 = vmul.f32 %v1302, %v1339
    %v1348 = vmul.f32 %v1304, %v1340
    %v1349 = vmul.f32 %v1306, %v1341
    %v1350 = vmul.f32 %v1308, %v1342
    %v1351 = vmul.f32 %v1310, %v1343
    %v1352 = vmul.f32 %v1312, %v1344
    %v1353 = vpack.c.bf16 %v1346, %v1345
    %v1354 = vpack.c.bf16 %v1348, %v1347
    %v1355 = vpack.c.bf16 %v1350, %v1349
    %v1356 = vpack.c.bf16 %v1352, %v1351
    %1357 = vrot.lane.b32.xlu0 %v296, 72
    %v1358 = vpop.permute.xlu0 %1357
    %1359 = vrot.lane.b32.xlu0 %v297, 72
    %v1360 = vpop.permute.xlu0 %1359
    %1361 = vrot.lane.b32.xlu0 %v298, 72
    %v1362 = vpop.permute.xlu0 %1361
    %1363 = vrot.lane.b32.xlu0 %v299, 72
    %v1364 = vpop.permute.xlu0 %1363
    %v1370 = vsel %vm398, %v1353, 0
    %v1373 = vsel %vm398, %v1354, 0
    %v1376 = vsel %vm398, %v1355, 0
    %v1379 = vsel %vm398, %v1356, 0
    %1381 = vmatprep.subr.bf16.mxu0 0
    %1382 = vmatpush1.bf16.msra.mxu0 0
    %1383 = vmatprep.subr.bf16.mxu0 0
    %1384 = vmatpush1.bf16.msra.mxu0 0
    %1385 = vmatprep.subr.bf16.mxu0 0
    %1386 = vmatpush1.bf16.msra.mxu0 0
    %1387 = vmatprep.subr.bf16.mxu0 0
    %1388 = vmatpush1.bf16.msra.mxu0 0
    %1389 = vmatprep.subr.bf16.mxu0 0
    %1390 = vmatpush1.bf16.msra.mxu0 %v1364
    %1391 = vmatprep.subr.bf16.mxu0 0
    %1392 = vmatpush1.bf16.msra.mxu0 %v1362
    %1393 = vmatprep.subr.bf16.mxu0 0
    %1394 = vmatpush1.bf16.msra.mxu0 %v1360
    %1395 = vmatprep.subr.bf16.mxu0 0
    %1396 = vmatpush1.bf16.msra.mxu0 %v1358
    %1397 = vmatprep.subr.bf16.mxu0 0
    %1398 = vmatpush2.bf16.msra.mxu0 0
    %1399 = vmatprep.subr.bf16.mxu0 0
    %1400 = vmatpush2.bf16.msra.mxu0 0
    %1401 = vmatprep.subr.bf16.mxu0 0
    %1402 = vmatpush2.bf16.msra.mxu0 0
    %1403 = vmatprep.subr.bf16.mxu0 0
    %1404 = vmatpush2.bf16.msra.mxu0 0
    %1405 = vmatprep.subr.bf16.mxu0 0
    %1406 = vmatpush2.bf16.msra.mxu0 0
    %1407 = vmatprep.subr.bf16.mxu0 0
    %1408 = vmatpush2.bf16.msra.mxu0 0
    %1409 = vmatprep.subr.bf16.mxu0 0
    %1410 = vmatpush2.bf16.msra.mxu0 0
    %1411 = vmatprep.subr.bf16.mxu0 0
    %1412 = vmatpush2.bf16.msra.mxu0 0
    %1413 = vmatprep.mubr.bf16.mxu0 0
    %1414 = vmatmul.mubr.bf16.gmra.mxu0 %v1370
    %v1415 = vpop.f32.mrf.mxu0
    %v1416 = vadd.f32 0.0, %v1415
    %v1417 = vpop.f32.mrf.mxu0
    %v1418 = vpop.f32.mrf.mxu0
    %v1419 = vadd.f32 0.0, %v1418
    %v1420 = vpop.f32.mrf.mxu0
    %1421 = vmatprep.mubr.bf16.mxu0 0
    %1422 = vmatmul.mubr.bf16.gmra.mxu0 %v1373
    %v1423 = vpop.f32.mrf.mxu0
    %v1424 = vadd.f32 0.0, %v1423
    %v1425 = vpop.f32.mrf.mxu0
    %v1426 = vpop.f32.mrf.mxu0
    %v1427 = vadd.f32 0.0, %v1426
    %v1428 = vpop.f32.mrf.mxu0
    %1429 = vmatprep.mubr.bf16.mxu0 0
    %1430 = vmatmul.mubr.bf16.gmra.mxu0 %v1376
    %v1431 = vpop.f32.mrf.mxu0
    %v1432 = vadd.f32 0.0, %v1431
    %v1433 = vpop.f32.mrf.mxu0
    %v1434 = vpop.f32.mrf.mxu0
    %v1435 = vadd.f32 0.0, %v1434
    %v1436 = vpop.f32.mrf.mxu0
    %1437 = vmatprep.mubr.bf16.mxu0 0
    %1438 = vmatmul.mubr.bf16.gmra.mxu0 %v1379
    %v1439 = vpop.f32.mrf.mxu0
    %v1440 = vadd.f32 0.0, %v1439
    %v1441 = vpop.f32.mrf.mxu0
    %v1442 = vpop.f32.mrf.mxu0
    %v1443 = vadd.f32 0.0, %v1442
    %v1444 = vpop.f32.mrf.mxu0
    %1445 = vdwg.mxu0
    %1454 = vrot.lane.b32.xlu0 %v773, 64
    %v1455 = vpop.permute.xlu0 %1454
    %1456 = vrot.lane.b32.xlu0 %v774, 64
    %v1457 = vpop.permute.xlu0 %1456
    %1458 = vrot.lane.b32.xlu0 %v775, 64
    %v1459 = vpop.permute.xlu0 %1458
    %1460 = vrot.lane.b32.xlu0 %v776, 64
    %v1461 = vpop.permute.xlu0 %1460
    %1462 = vrot.lane.b32.xlu0 %v777, 64
    %v1463 = vpop.permute.xlu0 %1462
    %1464 = vrot.lane.b32.xlu0 %v778, 64
    %v1465 = vpop.permute.xlu0 %1464
    %1466 = vrot.lane.b32.xlu0 %v779, 64
    %v1467 = vpop.permute.xlu0 %1466
    %1468 = vrot.lane.b32.xlu0 %v780, 64
    %v1469 = vpop.permute.xlu0 %1468
    %1486 = vrot.lane.b32.xlu0 %v1345, 64
    %v1487 = vpop.permute.xlu0 %1486
    %1488 = vrot.lane.b32.xlu0 %v1346, 64
    %v1489 = vpop.permute.xlu0 %1488
    %1490 = vrot.lane.b32.xlu0 %v1347, 64
    %v1491 = vpop.permute.xlu0 %1490
    %1492 = vrot.lane.b32.xlu0 %v1348, 64
    %v1493 = vpop.permute.xlu0 %1492
    %1494 = vrot.lane.b32.xlu0 %v1349, 64
    %v1495 = vpop.permute.xlu0 %1494
    %1496 = vrot.lane.b32.xlu0 %v1350, 64
    %v1497 = vpop.permute.xlu0 %1496
    %1498 = vrot.lane.b32.xlu0 %v1351, 64
    %v1499 = vpop.permute.xlu0 %1498
    %1500 = vrot.lane.b32.xlu0 %v1352, 64
    %v1501 = vpop.permute.xlu0 %1500
    %v1510 = vsel %vm398, %v479, %v1455
    %v1511 = vsel %vm398, %v480, %v1457
    %v1512 = vsel %vm398, %v481, %v1459
    %v1513 = vsel %vm398, %v482, %v1461
    %v1514 = vsel %vm398, %v483, %v1463
    %v1515 = vsel %vm398, %v484, %v1465
    %v1516 = vsel %vm398, %v485, %v1467
    %v1517 = vsel %vm398, %v486, %v1469
    %v1518 = vsel %vm398, %v1059, %v1487
    %v1519 = vsel %vm398, %v1060, %v1489
    %v1520 = vsel %vm398, %v1061, %v1491
    %v1521 = vsel %vm398, %v1062, %v1493
    %v1522 = vsel %vm398, %v1063, %v1495
    %v1523 = vsel %vm398, %v1064, %v1497
    %v1524 = vsel %vm398, %v1065, %v1499
    %v1525 = vsel %vm398, %v1066, %v1501
    %1526 = vst [vmem:[#allocation5] sm:$0xff] %v1510
    %1527 = vst [vmem:[#allocation5 + $0x8] sm:$0xff] %v1518
    %1528 = vst [vmem:[#allocation5 + $0x10] sm:$0xff] %v1511
    %1529 = vst [vmem:[#allocation5 + $0x18] sm:$0xff] %v1519
    %1530 = vst [vmem:[#allocation5 + $0x20] sm:$0xff] %v1512
    %1531 = vst [vmem:[#allocation5 + $0x28] sm:$0xff] %v1520
    %1532 = vst [vmem:[#allocation5 + $0x30] sm:$0xff] %v1513
    %1533 = vst [vmem:[#allocation5 + $0x38] sm:$0xff] %v1521
    %1534 = vst [vmem:[#allocation5 + $0x40] sm:$0xff] %v1514
    %1535 = vst [vmem:[#allocation5 + $0x48] sm:$0xff] %v1522
    %1536 = vst [vmem:[#allocation5 + $0x50] sm:$0xff] %v1515
    %1537 = vst [vmem:[#allocation5 + $0x58] sm:$0xff] %v1523
    %1538 = vst [vmem:[#allocation5 + $0x60] sm:$0xff] %v1516
    %1539 = vst [vmem:[#allocation5 + $0x68] sm:$0xff] %v1524
    %1540 = vst [vmem:[#allocation5 + $0x70] sm:$0xff] %v1517
    %1541 = vst [vmem:[#allocation5 + $0x78] sm:$0xff] %v1525
    %1550 = vrot.lane.b32.xlu0 %v844, 8
    %v1551 = vpop.permute.xlu0 %1550
    %1552 = vrot.lane.b32.xlu0 %v847, 8
    %v1553 = vpop.permute.xlu0 %1552
    %1554 = vrot.lane.b32.xlu0 %v852, 8
    %v1555 = vpop.permute.xlu0 %1554
    %1556 = vrot.lane.b32.xlu0 %v855, 8
    %v1557 = vpop.permute.xlu0 %1556
    %1558 = vrot.lane.b32.xlu0 %v860, 8
    %v1559 = vpop.permute.xlu0 %1558
    %1560 = vrot.lane.b32.xlu0 %v863, 8
    %v1561 = vpop.permute.xlu0 %1560
    %1562 = vrot.lane.b32.xlu0 %v868, 8
    %v1563 = vpop.permute.xlu0 %1562
    %1564 = vrot.lane.b32.xlu0 %v871, 8
    %v1565 = vpop.permute.xlu0 %1564
    %1582 = vrot.lane.b32.xlu0 %v1130, 16
    %v1583 = vpop.permute.xlu0 %1582
    %1584 = vrot.lane.b32.xlu0 %v1133, 16
    %v1585 = vpop.permute.xlu0 %1584
    %1586 = vrot.lane.b32.xlu0 %v1138, 16
    %v1587 = vpop.permute.xlu0 %1586
    %1588 = vrot.lane.b32.xlu0 %v1141, 16
    %v1589 = vpop.permute.xlu0 %1588
    %1590 = vrot.lane.b32.xlu0 %v1146, 16
    %v1591 = vpop.permute.xlu0 %1590
    %1592 = vrot.lane.b32.xlu0 %v1149, 16
    %v1593 = vpop.permute.xlu0 %1592
    %1594 = vrot.lane.b32.xlu0 %v1154, 16
    %v1595 = vpop.permute.xlu0 %1594
    %1596 = vrot.lane.b32.xlu0 %v1157, 16
    %v1597 = vpop.permute.xlu0 %1596
    %1614 = vrot.lane.b32.xlu0 %v1416, 24
    %v1615 = vpop.permute.xlu0 %1614
    %1616 = vrot.lane.b32.xlu0 %v1419, 24
    %v1617 = vpop.permute.xlu0 %1616
    %1618 = vrot.lane.b32.xlu0 %v1424, 24
    %v1619 = vpop.permute.xlu0 %1618
    %1620 = vrot.lane.b32.xlu0 %v1427, 24
    %v1621 = vpop.permute.xlu0 %1620
    %1622 = vrot.lane.b32.xlu0 %v1432, 24
    %v1623 = vpop.permute.xlu0 %1622
    %1624 = vrot.lane.b32.xlu0 %v1435, 24
    %v1625 = vpop.permute.xlu0 %1624
    %1626 = vrot.lane.b32.xlu0 %v1440, 24
    %v1627 = vpop.permute.xlu0 %1626
    %1628 = vrot.lane.b32.xlu0 %v1443, 24
    %v1629 = vpop.permute.xlu0 %1628
    %v1638 = vsel %vm308, %v554, %v1551
    %v1639 = vsel %vm308, %v557, %v1553
    %v1640 = vsel %vm308, %v562, %v1555
    %v1641 = vsel %vm308, %v565, %v1557
    %v1642 = vsel %vm308, %v570, %v1559
    %v1643 = vsel %vm308, %v573, %v1561
    %v1644 = vsel %vm308, %v578, %v1563
    %v1645 = vsel %vm308, %v581, %v1565
    %vm1646 = vcmask 130048
    %v1647 = vsel %vm1646, %v1638, %v1583
    %v1648 = vsel %vm1646, %v1639, %v1585
    %v1649 = vsel %vm1646, %v1640, %v1587
    %v1650 = vsel %vm1646, %v1641, %v1589
    %v1651 = vsel %vm1646, %v1642, %v1591
    %v1652 = vsel %vm1646, %v1643, %v1593
    %v1653 = vsel %vm1646, %v1644, %v1595
    %v1654 = vsel %vm1646, %v1645, %v1597
    %vm1655 = vcmask 195584
    %v1656 = vsel %vm1655, %v1647, %v1615
    %v1657 = vsel %vm1655, %v1648, %v1617
    %v1658 = vsel %vm1655, %v1649, %v1619
    %v1659 = vsel %vm1655, %v1650, %v1621
    %v1660 = vsel %vm1655, %v1651, %v1623
    %v1661 = vsel %vm1655, %v1652, %v1625
    %v1662 = vsel %vm1655, %v1653, %v1627
    %v1663 = vsel %vm1655, %v1654, %v1629
    %v1664 = vpack.c.bf16 %v1657, %v1656
    %v1665 = vpack.c.bf16 %v1659, %v1658
    %v1666 = vpack.c.bf16 %v1661, %v1660
    %v1667 = vpack.c.bf16 %v1663, %v1662
    %v1668 = vld [vmem:[#allocation2] sm:$0xf]
    %v1669 = vld [vmem:[#allocation2 + $0x4] sm:$0xf]
    %v1670 = vld [vmem:[#allocation2 + $0x8] sm:$0xf]
    %v1671 = vld [vmem:[#allocation2 + $0xc] sm:$0xf]
    %v1676 = vunpack.c.l.b16 %v1668
    %v1677 = vunpack.c.l.b16 %v1669
    %v1678 = vunpack.c.l.b16 %v1670
    %v1679 = vunpack.c.l.b16 %v1671
    %v1680 = vpack.c.b16 %v1677, %v1676
    %v1681 = vpack.c.b16 %v1679, %v1678
    %v1685 = vsel %vm85, %v1664, 0
    %v1688 = vsel %vm85, %v1665, 0
    %v1691 = vsel %vm85, %v1666, 0
    %v1694 = vsel %vm85, %v1667, 0
    %1696 = vmatprep.subr.bf16.mxu0 0
    %1697 = vmatpush1.bf16.msra.mxu0 0
    %1698 = vmatprep.subr.bf16.mxu0 0
    %1699 = vmatpush1.bf16.msra.mxu0 0
    %1700 = vmatprep.subr.bf16.mxu0 0
    %1701 = vmatpush1.bf16.msra.mxu0 0
    %1702 = vmatprep.subr.bf16.mxu0 0
    %1703 = vmatpush1.bf16.msra.mxu0 0
    %1704 = vmatprep.subr.bf16.mxu0 0
    %1705 = vmatpush1.bf16.msra.mxu0 0
    %1706 = vmatprep.subr.bf16.mxu0 0
    %1707 = vmatpush1.bf16.msra.mxu0 0
    %1708 = vmatprep.subr.bf16.mxu0 0
    %1709 = vmatpush1.bf16.msra.mxu0 %v1681
    %1710 = vmatprep.subr.bf16.mxu0 0
    %1711 = vmatpush1.bf16.msra.mxu0 %v1680
    %1712 = vmatprep.subr.bf16.mxu0 0
    %1713 = vmatpush2.bf16.msra.mxu0 0
    %1714 = vmatprep.subr.bf16.mxu0 0
    %1715 = vmatpush2.bf16.msra.mxu0 0
    %1716 = vmatprep.subr.bf16.mxu0 0
    %1717 = vmatpush2.bf16.msra.mxu0 0
    %1718 = vmatprep.subr.bf16.mxu0 0
    %1719 = vmatpush2.bf16.msra.mxu0 0
    %1720 = vmatprep.subr.bf16.mxu0 0
    %1721 = vmatpush2.bf16.msra.mxu0 0
    %1722 = vmatprep.subr.bf16.mxu0 0
    %1723 = vmatpush2.bf16.msra.mxu0 0
    %1724 = vmatprep.subr.bf16.mxu0 0
    %1725 = vmatpush2.bf16.msra.mxu0 0
    %1726 = vmatprep.subr.bf16.mxu0 0
    %1727 = vmatpush2.bf16.msra.mxu0 0
    %1728 = vmatprep.mubr.bf16.mxu0 0
    %1729 = vmatmul.mubr.bf16.gmra.mxu0 %v1685
    %v1730 = vpop.f32.mrf.mxu0
    %v1731 = vadd.f32 0.0, %v1730
    %v1732 = vpop.f32.mrf.mxu0
    %v1733 = vpop.f32.mrf.mxu0
    %v1734 = vadd.f32 0.0, %v1733
    %v1735 = vpop.f32.mrf.mxu0
    %1736 = vmatprep.mubr.bf16.mxu0 0
    %1737 = vmatmul.mubr.bf16.gmra.mxu0 %v1688
    %v1738 = vpop.f32.mrf.mxu0
    %v1739 = vadd.f32 0.0, %v1738
    %v1740 = vpop.f32.mrf.mxu0
    %v1741 = vpop.f32.mrf.mxu0
    %v1742 = vadd.f32 0.0, %v1741
    %v1743 = vpop.f32.mrf.mxu0
    %1744 = vmatprep.mubr.bf16.mxu0 0
    %1745 = vmatmul.mubr.bf16.gmra.mxu0 %v1691
    %v1746 = vpop.f32.mrf.mxu0
    %v1747 = vadd.f32 0.0, %v1746
    %v1748 = vpop.f32.mrf.mxu0
    %v1749 = vpop.f32.mrf.mxu0
    %v1750 = vadd.f32 0.0, %v1749
    %v1751 = vpop.f32.mrf.mxu0
    %1752 = vmatprep.mubr.bf16.mxu0 0
    %1753 = vmatmul.mubr.bf16.gmra.mxu0 %v1694
    %v1754 = vpop.f32.mrf.mxu0
    %v1755 = vadd.f32 0.0, %v1754
    %v1756 = vpop.f32.mrf.mxu0
    %v1757 = vpop.f32.mrf.mxu0
    %v1758 = vadd.f32 0.0, %v1757
    %v1759 = vpop.f32.mrf.mxu0
    %1760 = vdwg.mxu0
    %1761 = vst.msk [vmem:[%s6] sm:$0xff] %vm85, %v1731
    %1762 = vst.msk [vmem:[%s6 + $0x8] sm:$0xff] %vm85, %v1734
    %1763 = vst.msk [vmem:[%s6 + $0x10] sm:$0xff] %vm85, %v1739
    %1764 = vst.msk [vmem:[%s6 + $0x18] sm:$0xff] %vm85, %v1742
    %1765 = vst.msk [vmem:[%s6 + $0x20] sm:$0xff] %vm85, %v1747
    %1766 = vst.msk [vmem:[%s6 + $0x28] sm:$0xff] %vm85, %v1750
    %1767 = vst.msk [vmem:[%s6 + $0x30] sm:$0xff] %vm85, %v1755
    %1768 = vst.msk [vmem:[%s6 + $0x38] sm:$0xff] %vm85, %v1758
    // Predicated region
    $region30: #{tpu_custom_call.1} parent=1 // pred_check
      _
    $region31: #{tpu_custom_call.1} parent=1 // pred_check_branch
      %1770 = sbr.rel (0) target = $region33
    $region32: #{tpu_custom_call.1} parent=1 // pred_region
      _
    $region33: #{tpu_custom_call.1} parent=1 // pred_fallthru
      _
    // Predicated region
    $region34: #{tpu_custom_call.1} parent=1 // pred_check
      _
    $region35: #{tpu_custom_call.1} parent=1 // pred_check_branch
      %1772 = sbr.rel (0) target = $region37
    $region36: #{tpu_custom_call.1} parent=1 // pred_region
      %s1774 = ssub.s32 2048, 2048
      %1775 = vsyncadd [#allocation4], %s1774
      %s1776 = sshll.u32 [#allocation5], 4
      %s1777 = int_to_ptr.vmem [resolvable:$true] %s1776
      %1782 = dma.vmem_to_hbm [thread:$0]  %s1777, 2048, %s7, [#allocation4], 256, 256, 16
    $region37: #{tpu_custom_call.1} parent=1 // pred_fallthru
      _
    // Predicated region
    $region38: #{tpu_custom_call.1} parent=1 // pred_check
      _
    $region39: #{tpu_custom_call.1} parent=1 // pred_check_branch
      %1784 = sbr.rel (0) target = $region41
    $region40: #{tpu_custom_call.1} parent=1 // pred_region
      _
    $region41: #{tpu_custom_call.1} parent=1 // pred_fallthru
      _
    // Predicated region
    $region42: #{tpu_custom_call.1} parent=1 // pred_check
      _
    $region43: #{tpu_custom_call.1} parent=1 // pred_check_branch
      %1786 = sbr.rel (0) target = $region45
    $region44: #{tpu_custom_call.1} parent=1 // pred_region
      %1787 = dma.done [#allocation4], 2048
    $region45: #{tpu_custom_call.1} parent=1 // pred_fallthru
      _
    %1788 = vsyncpa [#allocation3], 1
    %1789 = vsyncpa [#allocation4], 1

</llo_original>
